<compile_context>
chip_gen: v5e
topology: v5e:2x2
jax: 0.10.0
libtpu: 0.0.40
codegen_flags: <defaults>
</compile_context>

<pallas_src>
import math
import functools

import jax
import jax.numpy as jnp
from jax import lax
from jax.experimental import pallas as pl
from jax.experimental.pallas import tpu as pltpu  # noqa: F401  (gridless call needs no TPU params)


# --------------------------------------------------------------------------
# Positional encoding (identical math to _positional_encoding_1d)
# --------------------------------------------------------------------------
def positional_encoding_1d(d_model, time):
    # TODO(synk): assumes even d_model (true for D=32), like the reference for even dims.
    position = jnp.arange(time, dtype=jnp.float32)[:, None]
    div_term = jnp.exp(
        jnp.arange(0, d_model, 2, dtype=jnp.float32) * -(math.log(10000.0) / d_model)
    )
    pe = jnp.zeros((time, d_model), dtype=jnp.float32)
    pe = pe.at[:, 0::2].set(jnp.sin(position * div_term))
    pe = pe.at[:, 1::2].set(jnp.cos(position * div_term))
    return pe


# --------------------------------------------------------------------------
# Static layout of the single packed parameter blob
# --------------------------------------------------------------------------
def _round8(n):
    return ((n + 7) // 8) * 8


def _param_layout(B, D, T, nhead, n_layers):
    """Static (Python-int) row/col layout of every tensor inside the packed blob.

    Every tensor starts on an 8-row (sublane-tile) boundary and at lane 0, so each
    in-kernel slice is a tile-aligned VMEM load with no relayout.
    """
    F = 4 * D
    BT = B * T
    lane = max(128, 3 * D, F, BT)
    per_layer_shapes = [
        ("wqkv", D, 3 * D), ("bqkv", 1, 3 * D),
        ("wo", D, D), ("bo", 1, D),
        ("g1", 1, D), ("be1", 1, D),
        ("w1", D, F), ("bf1", 1, F),
        ("w2", F, D), ("bf2", 1, D),
        ("g2", 1, D), ("be2", 1, D),
    ]
    global_shapes = [("pos", BT, D), ("bias", nhead * BT, BT)]

    layout = {"lane": lane, "globals": {}, "layers": []}
    row = 0
    for name, r, c in global_shapes:
        layout["globals"][name] = (row, r, c)
        row += _round8(r)
    for _ in range(n_layers):
        entries = {}
        for name, r, c in per_layer_shapes:
            entries[name] = (row, r, c)
            row += _round8(r)
        layout["layers"].append(entries)
    layout["rows"] = row
    return layout


def pack_params(layer_params, B, D, T, nhead):
    """Pack pos / block-diagonal bias / all layer weights into ONE f32 blob.

    Built once OUTSIDE the jitted forward, so each call pays a single HBM->VMEM input
    DMA instead of 14 input DMAs plus 12 jnp.stack concatenates.  Weights are stored
    as (in, out), i.e. already transposed from PyTorch's (out, in) nn.Linear layout.
    """
    n_layers = len(layer_params)
    layout = _param_layout(B, D, T, nhead, n_layers)

    pos_bt = jnp.tile(positional_encoding_1d(D, T), (B, 1))                 # (BT, D)

    # Block-diagonal additive bias (0 within a batch element, -1e30 across) lets the
    # whole batch share one (BT, BT) score matmul per head; pre-tiled over heads so the
    # kernel's single stacked softmax needs no broadcast.  Relies on f32 exp underflow.
    batch_id = jnp.repeat(jnp.arange(B, dtype=jnp.int32), T)
    bias = jnp.where(batch_id[:, None] == batch_id[None, :], 0.0, -1e30)
    bias_h = jnp.tile(bias.astype(jnp.float32), (nhead, 1))                 # (nhead*BT, BT)

    blob = jnp.zeros((layout["rows"], layout["lane"]), jnp.float32)

    def put(b, entry, val):
        r0, r, c = entry
        return b.at[r0:r0 + r, :c].set(jnp.asarray(val, jnp.float32).reshape(r, c))

    blob = put(blob, layout["globals"]["pos"], pos_bt)
    blob = put(blob, layout["globals"]["bias"], bias_h)
    for l, p in enumerate(layer_params):
        for name, entry in layout["layers"][l].items():
            blob = put(blob, entry, p[name])
    return blob, layout


# --------------------------------------------------------------------------
# Fused kernel: permute-in + pos-add + n_layers post-norm encoder layers + permute-out
# --------------------------------------------------------------------------
def fused_context_kernel(x_ref, blob_ref, o_ref, *, nhead, layout, eps=1e-5):
    B, D, T = x_ref.shape
    BT = B * T
    hd = D // nhead
    scale = 1.0 / math.sqrt(hd)

    def ld(entry):                       # tile-aligned static slice of the packed blob
        r0, r, c = entry
        return blob_ref[r0:r0 + r, :c]

    pos = ld(layout["globals"]["pos"])           # (BT, D)      pre-tiled over batch
    bias = ld(layout["globals"]["bias"])         # (nhead*BT, BT) block-diag, pre-tiled over heads

    # (B, D, T) -> (B, T, D) -> (BT, D): one batched minor-dim transpose plus a free
    # sublane-collapse reshape (T == 8 == sublane tile), then the positional add.
    h = jnp.transpose(x_ref[...], (0, 2, 1)).reshape(BT, D).astype(jnp.float32) + pos

    for l in range(len(layout["layers"])):       # static unroll over layers
        L = layout["layers"][l]
        wqkv, bqkv = ld(L["wqkv"]), ld(L["bqkv"])
        wo, bo = ld(L["wo"]), ld(L["bo"])
        g1, be1 = ld(L["g1"]), ld(L["be1"])
        w1, bf1 = ld(L["w1"]), ld(L["bf1"])
        w2, bf2 = ld(L["w2"]), ld(L["bf2"])
        g2, be2 = ld(L["g2"]), ld(L["be2"])

        # ---- multi-head self-attention (batch folded onto matmul rows) ----
        qkv = jnp.dot(h, wqkv, preferred_element_type=jnp.float32) + bqkv   # (BT, 3D)

        # Per-head scores stacked along sublanes -> ONE softmax per layer
        # (1 XLU max + 1 EUP exp + 1 XLU sum instead of nhead of each).
        s_blocks = []
        for hh in range(nhead):                  # static unroll over heads
            lo = hh * hd
            q_h = qkv[:, lo:lo + hd]
            k_h = qkv[:, D + lo:D + lo + hd]
            s_blocks.append(
                lax.dot_general(q_h, k_h, (((1,), (1,)), ((), ())),
                                preferred_element_type=jnp.float32))        # (BT, BT)
        s = jnp.concatenate(s_blocks, axis=0) * scale + bias                # (nhead*BT, BT)
        s = s - jnp.max(s, axis=-1, keepdims=True)
        p = jnp.exp(s)
        p = p / jnp.sum(p, axis=-1, keepdims=True)   # exact divide: EUP/VPU not the binding slot

        # Head contexts accumulated straight through per-head row slices of the output
        # projection (no lane-axis concatenate of head outputs).
        attn = jnp.zeros((BT, D), jnp.float32)
        for hh in range(nhead):
            lo = hh * hd
            v_h = qkv[:, 2 * D + lo:2 * D + lo + hd]
            ctx = jnp.dot(p[hh * BT:(hh + 1) * BT, :], v_h,
                          preferred_element_type=jnp.float32)               # (BT, hd)
            attn = attn + jnp.dot(ctx, wo[lo:lo + hd, :],
                                  preferred_element_type=jnp.float32)       # (BT, D)
        attn = attn + bo

        # ---- residual + LayerNorm1 (post-norm) ----
        h1 = h + attn
        mu1 = jnp.mean(h1, axis=-1, keepdims=True)
        var1 = jnp.mean((h1 - mu1) ** 2, axis=-1, keepdims=True)
        h1 = (h1 - mu1) * lax.rsqrt(var1 + eps) * g1 + be1

        # ---- feed-forward (relu) ----
        f = jnp.dot(h1, w1, preferred_element_type=jnp.float32) + bf1
        f = jnp.maximum(f, 0.0)
        f = jnp.dot(f, w2, preferred_element_type=jnp.float32) + bf2

        # ---- residual + LayerNorm2 ----
        h2 = h1 + f
        mu2 = jnp.mean(h2, axis=-1, keepdims=True)
        var2 = jnp.mean((h2 - mu2) ** 2, axis=-1, keepdims=True)
        h = (h2 - mu2) * lax.rsqrt(var2 + eps) * g2 + be2

    # Output permute folded into the store: ONE (BT, D) -> (D, BT) transpose, then
    # per-batch lane slices into the (B, D, T) output (instead of B separate transposes).
    # TODO(synk): a batch-first (B, T, D) consumer would make this store fully lane-dense
    # and drop the transpose entirely.
    hT = jnp.transpose(h, (1, 0))
    for b in range(B):
        o_ref[b] = hT[:, b * T:(b + 1) * T].astype(o_ref.dtype)


# --------------------------------------------------------------------------
# Wrapper: one gridless pallas_call, everything resident in VMEM
# --------------------------------------------------------------------------
def transformer_context_network(x, param_blob, *, nhead, layout):
    """x: (B, dim, T) -> (B, dim, T). param_blob/layout from pack_params()."""
    B, D, T = x.shape
    # Folded-batch attention is O((B*T)^2): fine while B*T stays small.
    # TODO(synk): switch to per-batch attention with grid=(B,) and
    # dimension_semantics=("parallel",) (megacore / 2nd TC on v7x) once B*T >~ a few hundred.
    assert B * T <= 512, "folded-batch block-diagonal attention is only meant for small B*T"
    kernel = functools.partial(fused_context_kernel, nhead=nhead, layout=layout)
    # Gridless, single-TensorCore, no BlockSpec tiling / pipelining: ~340 KiB of packed
    # weights + ~2 KiB of activations fit VMEM on v5e/v6e (128 MiB) and v7x (64 MiB); any
    # grid step or double-buffering would only add fixed overhead at this size.
    return pl.pallas_call(
        kernel,
        out_shape=jax.ShapeDtypeStruct((B, D, T), x.dtype),
    )(x, param_blob)


# --------------------------------------------------------------------------
# Deterministic synthetic parameter init (weights stored as (in, out))
# --------------------------------------------------------------------------
def init_layer_params(key, D):
    F = 4 * D
    ks = jax.random.split(key, 6)
    s = 0.05
    return {
        "wqkv": s * jax.random.normal(ks[0], (D, 3 * D), jnp.float32),
        "bqkv": s * jax.random.normal(ks[1], (1, 3 * D), jnp.float32),
        "wo":   s * jax.random.normal(ks[2], (D, D), jnp.float32),
        "bo":   s * jax.random.normal(ks[3], (1, D), jnp.float32),
        "g1":   jnp.ones((1, D), jnp.float32),
        "be1":  jnp.zeros((1, D), jnp.float32),
        "w1":   s * jax.random.normal(ks[4], (D, F), jnp.float32),
        "bf1":  jnp.zeros((1, F), jnp.float32),
        "w2":   s * jax.random.normal(ks[5], (F, D), jnp.float32),
        "bf2":  jnp.zeros((1, D), jnp.float32),
        "g2":   jnp.ones((1, D), jnp.float32),
        "be2":  jnp.zeros((1, D), jnp.float32),
    }


# --------------------------------------------------------------------------
# Pure-JAX reference (same math) for a correctness check
# --------------------------------------------------------------------------
def reference_forward(x, layer_params, nhead, eps=1e-5):
    B, D, T = x.shape
    hd = D // nhead
    with jax.default_matmul_precision("float32"):
        xt = jnp.transpose(x, (0, 2, 1)) + positional_encoding_1d(D, T)[None]
        for p in layer_params:
            qkv = xt @ p["wqkv"] + p["bqkv"][0]
            q, k, v = qkv[..., :D], qkv[..., D:2 * D], qkv[..., 2 * D:]
            q = q.reshape(B, T, nhead, hd).transpose(0, 2, 1, 3)
            k = k.reshape(B, T, nhead, hd).transpose(0, 2, 1, 3)
            v = v.reshape(B, T, nhead, hd).transpose(0, 2, 1, 3)
            s = jnp.einsum("bhqd,bhkd->bhqk", q, k) / math.sqrt(hd)
            pattn = jax.nn.softmax(s, axis=-1)
            a = jnp.einsum("bhqk,bhkd->bhqd", pattn, v).transpose(0, 2, 1, 3).reshape(B, T, D)
            a = a @ p["wo"] + p["bo"][0]
            h1 = xt + a
            mu = h1.mean(-1, keepdims=True)
            var = ((h1 - mu) ** 2).mean(-1, keepdims=True)
            h1 = (h1 - mu) * lax.rsqrt(var + eps) * p["g1"][0] + p["be1"][0]
            f = jnp.maximum(h1 @ p["w1"] + p["bf1"][0], 0.0) @ p["w2"] + p["bf2"][0]
            h2 = h1 + f
            mu2 = h2.mean(-1, keepdims=True)
            var2 = ((h2 - mu2) ** 2).mean(-1, keepdims=True)
            xt = (h2 - mu2) * lax.rsqrt(var2 + eps) * p["g2"][0] + p["be2"][0]
        return jnp.transpose(xt, (0, 2, 1))


if __name__ == "__main__":
    # config: dim=32, n_heads=4, n_layers=2, dim_feedforward=128, dropout=0.0,
    #         activation='relu', use_pre_conv=False
    B, D, T, NHEAD, NLAYERS = 2, 32, 8, 4, 2

    key = jax.random.PRNGKey(0)
    kx, kp = jax.random.split(key)
    x = jax.random.normal(kx, (B, D, T), dtype=jnp.float32)

    layer_params = [init_layer_params(k, D) for k in jax.random.split(kp, NLAYERS)]

    # Pack every weight / constant ONCE, outside the jitted forward.
    param_blob, layout = pack_params(layer_params, B=B, D=D, T=T, nhead=NHEAD)

    fwd = jax.jit(
        lambda xx, bb: transformer_context_network(xx, bb, nhead=NHEAD, layout=layout)
    )
    y = jax.block_until_ready(fwd(x, param_blob))

    assert y.shape == (B, D, T), y.shape
    y_ref = reference_forward(x, layer_params, NHEAD)
    # Exact softmax normalization in the kernel; the remaining delta vs the reference is
    # MXU-vs-XLA f32 matmul rounding, comfortably inside 2e-3 at these O(1) post-LN outputs.
    assert jnp.allclose(y, y_ref, atol=2e-3, rtol=2e-3), float(jnp.max(jnp.abs(y - y_ref)))
    print("KERNEL_OK")
</pallas_src>

<mosaic_0001>
module attributes {stable_mosaic.version = 11 : i64} {
  func.func @fused_context_kernel(%arg0: memref<2x32x8xf32, #tpu.memory_space<vmem>>, %arg1: memref<656x128xf32, #tpu.memory_space<vmem>>, %arg2: memref<2x32x8xf32, #tpu.memory_space<vmem>>) attributes {dimension_semantics = [], scalar_prefetch = 0 : i64, scratch_operands = 0 : i64, tpu.core_type = #tpu.core_type<tc>} {
    %c0 = arith.constant 0 : index
    %c0_0 = arith.constant 0 : index
    %0 = vector.load %arg1[%c0, %c0_0] : memref<656x128xf32, #tpu.memory_space<vmem>>, vector<16x32xf32>
    %c16 = arith.constant 16 : index
    %c0_1 = arith.constant 0 : index
    %1 = vector.load %arg1[%c16, %c0_1] : memref<656x128xf32, #tpu.memory_space<vmem>>, vector<64x16xf32>
    %c0_2 = arith.constant 0 : index
    %c0_3 = arith.constant 0 : index
    %c0_4 = arith.constant 0 : index
    %2 = vector.load %arg0[%c0_2, %c0_3, %c0_4] : memref<2x32x8xf32, #tpu.memory_space<vmem>>, vector<2x32x8xf32>
    %3 = tpu.transpose %2, [0, 2, 1] : vector<2x32x8xf32> -> vector<2x8x32xf32>
    %4 = vector.shape_cast %3 : vector<2x8x32xf32> to vector<16x32xf32>
    %5 = arith.addf %4, %0 : vector<16x32xf32>
    %c80 = arith.constant 80 : index
    %c0_5 = arith.constant 0 : index
    %6 = vector.load %arg1[%c80, %c0_5] : memref<656x128xf32, #tpu.memory_space<vmem>>, vector<32x96xf32>
    %c112 = arith.constant 112 : index
    %c0_6 = arith.constant 0 : index
    %7 = vector.load %arg1[%c112, %c0_6] : memref<656x128xf32, #tpu.memory_space<vmem>>, vector<1x96xf32>
    %c120 = arith.constant 120 : index
    %c0_7 = arith.constant 0 : index
    %8 = vector.load %arg1[%c120, %c0_7] : memref<656x128xf32, #tpu.memory_space<vmem>>, vector<32x32xf32>
    %c152 = arith.constant 152 : index
    %c0_8 = arith.constant 0 : index
    %9 = vector.load %arg1[%c152, %c0_8] : memref<656x128xf32, #tpu.memory_space<vmem>>, vector<1x32xf32>
    %c160 = arith.constant 160 : index
    %c0_9 = arith.constant 0 : index
    %10 = vector.load %arg1[%c160, %c0_9] : memref<656x128xf32, #tpu.memory_space<vmem>>, vector<1x32xf32>
    %c168 = arith.constant 168 : index
    %c0_10 = arith.constant 0 : index
    %11 = vector.load %arg1[%c168, %c0_10] : memref<656x128xf32, #tpu.memory_space<vmem>>, vector<1x32xf32>
    %c176 = arith.constant 176 : index
    %c0_11 = arith.constant 0 : index
    %12 = vector.load %arg1[%c176, %c0_11] : memref<656x128xf32, #tpu.memory_space<vmem>>, vector<32x128xf32>
    %c208 = arith.constant 208 : index
    %c0_12 = arith.constant 0 : index
    %13 = vector.load %arg1[%c208, %c0_12] : memref<656x128xf32, #tpu.memory_space<vmem>>, vector<1x128xf32>
    %c216 = arith.constant 216 : index
    %c0_13 = arith.constant 0 : index
    %14 = vector.load %arg1[%c216, %c0_13] : memref<656x128xf32, #tpu.memory_space<vmem>>, vector<128x32xf32>
    %c344 = arith.constant 344 : index
    %c0_14 = arith.constant 0 : index
    %15 = vector.load %arg1[%c344, %c0_14] : memref<656x128xf32, #tpu.memory_space<vmem>>, vector<1x32xf32>
    %c352 = arith.constant 352 : index
    %c0_15 = arith.constant 0 : index
    %16 = vector.load %arg1[%c352, %c0_15] : memref<656x128xf32, #tpu.memory_space<vmem>>, vector<1x32xf32>
    %c360 = arith.constant 360 : index
    %c0_16 = arith.constant 0 : index
    %17 = vector.load %arg1[%c360, %c0_16] : memref<656x128xf32, #tpu.memory_space<vmem>>, vector<1x32xf32>
    %cst = arith.constant dense<0.000000e+00> : vector<16x96xf32>
    %18 = tpu.matmul %5, %6, %cst {dimension_numbers = #tpu.dot_dimension_numbers<[1], [0], [0], [1], [0, 0, 1, 1], [], []>} : vector<16x32xf32>, vector<32x96xf32>, vector<16x96xf32> -> vector<16x96xf32>
    %19 = vector.broadcast %7 : vector<1x96xf32> to vector<16x96xf32>
    %20 = arith.addf %18, %19 : vector<16x96xf32>
    %21 = vector.extract_strided_slice %20 {offsets = [0, 0], sizes = [16, 8], strides = [1, 1]} : vector<16x96xf32> to vector<16x8xf32>
    %22 = vector.extract_strided_slice %20 {offsets = [0, 32], sizes = [16, 8], strides = [1, 1]} : vector<16x96xf32> to vector<16x8xf32>
    %cst_17 = arith.constant dense<0.000000e+00> : vector<16x16xf32>
    %23 = tpu.matmul %21, %22, %cst_17 {dimension_numbers = #tpu.dot_dimension_numbers<[1], [1], [0], [0], [0, 0, 1, 0], [], []>} : vector<16x8xf32>, vector<16x8xf32>, vector<16x16xf32> -> vector<16x16xf32>
    %24 = vector.extract_strided_slice %20 {offsets = [0, 8], sizes = [16, 8], strides = [1, 1]} : vector<16x96xf32> to vector<16x8xf32>
    %25 = vector.extract_strided_slice %20 {offsets = [0, 40], sizes = [16, 8], strides = [1, 1]} : vector<16x96xf32> to vector<16x8xf32>
    %cst_18 = arith.constant dense<0.000000e+00> : vector<16x16xf32>
    %26 = tpu.matmul %24, %25, %cst_18 {dimension_numbers = #tpu.dot_dimension_numbers<[1], [1], [0], [0], [0, 0, 1, 0], [], []>} : vector<16x8xf32>, vector<16x8xf32>, vector<16x16xf32> -> vector<16x16xf32>
    %27 = vector.extract_strided_slice %20 {offsets = [0, 16], sizes = [16, 8], strides = [1, 1]} : vector<16x96xf32> to vector<16x8xf32>
    %28 = vector.extract_strided_slice %20 {offsets = [0, 48], sizes = [16, 8], strides = [1, 1]} : vector<16x96xf32> to vector<16x8xf32>
    %cst_19 = arith.constant dense<0.000000e+00> : vector<16x16xf32>
    %29 = tpu.matmul %27, %28, %cst_19 {dimension_numbers = #tpu.dot_dimension_numbers<[1], [1], [0], [0], [0, 0, 1, 0], [], []>} : vector<16x8xf32>, vector<16x8xf32>, vector<16x16xf32> -> vector<16x16xf32>
    %30 = vector.extract_strided_slice %20 {offsets = [0, 24], sizes = [16, 8], strides = [1, 1]} : vector<16x96xf32> to vector<16x8xf32>
    %31 = vector.extract_strided_slice %20 {offsets = [0, 56], sizes = [16, 8], strides = [1, 1]} : vector<16x96xf32> to vector<16x8xf32>
    %cst_20 = arith.constant dense<0.000000e+00> : vector<16x16xf32>
    %32 = tpu.matmul %30, %31, %cst_20 {dimension_numbers = #tpu.dot_dimension_numbers<[1], [1], [0], [0], [0, 0, 1, 0], [], []>} : vector<16x8xf32>, vector<16x8xf32>, vector<16x16xf32> -> vector<16x16xf32>
    %33 = tpu.concatenate %23, %26, %29, %32 in 0 : vector<16x16xf32>, vector<16x16xf32>, vector<16x16xf32>, vector<16x16xf32> -> vector<64x16xf32>
    %cst_21 = arith.constant 0.353553385 : f32
    %34 = vector.broadcast %cst_21 : f32 to vector<64x16xf32>
    %35 = arith.mulf %33, %34 : vector<64x16xf32>
    %36 = arith.addf %35, %1 : vector<64x16xf32>
    %cst_22 = arith.constant dense<0xFF800000> : vector<64xf32>
    %37 = vector.multi_reduction <maximumf>, %36, %cst_22 [1] : vector<64x16xf32> to vector<64xf32>
    %38 = vector.shape_cast %37 : vector<64xf32> to vector<64x1xf32>
    %39 = vector.broadcast %38 : vector<64x1xf32> to vector<64x16xf32>
    %40 = arith.subf %36, %39 : vector<64x16xf32>
    %41 = math.exp %40 : vector<64x16xf32>
    %cst_23 = arith.constant dense<0.000000e+00> : vector<64xf32>
    %42 = vector.multi_reduction <add>, %41, %cst_23 [1] : vector<64x16xf32> to vector<64xf32>
    %43 = vector.shape_cast %42 : vector<64xf32> to vector<64x1xf32>
    %44 = vector.broadcast %43 : vector<64x1xf32> to vector<64x16xf32>
    %45 = arith.divf %41, %44 : vector<64x16xf32>
    %cst_24 = arith.constant 0.000000e+00 : f32
    %46 = vector.broadcast %cst_24 : f32 to vector<16x32xf32>
    %47 = vector.extract_strided_slice %20 {offsets = [0, 64], sizes = [16, 8], strides = [1, 1]} : vector<16x96xf32> to vector<16x8xf32>
    %48 = vector.extract_strided_slice %45 {offsets = [0, 0], sizes = [16, 16], strides = [1, 1]} : vector<64x16xf32> to vector<16x16xf32>
    %cst_25 = arith.constant dense<0.000000e+00> : vector<16x8xf32>
    %49 = tpu.matmul %48, %47, %cst_25 {dimension_numbers = #tpu.dot_dimension_numbers<[1], [0], [0], [1], [0, 0, 1, 1], [], []>} : vector<16x16xf32>, vector<16x8xf32>, vector<16x8xf32> -> vector<16x8xf32>
    %50 = vector.extract_strided_slice %8 {offsets = [0, 0], sizes = [8, 32], strides = [1, 1]} : vector<32x32xf32> to vector<8x32xf32>
    %cst_26 = arith.constant dense<0.000000e+00> : vector<16x32xf32>
    %51 = tpu.matmul %49, %50, %cst_26 {dimension_numbers = #tpu.dot_dimension_numbers<[1], [0], [0], [1], [0, 0, 1, 1], [], []>} : vector<16x8xf32>, vector<8x32xf32>, vector<16x32xf32> -> vector<16x32xf32>
    %52 = arith.addf %46, %51 : vector<16x32xf32>
    %53 = vector.extract_strided_slice %20 {offsets = [0, 72], sizes = [16, 8], strides = [1, 1]} : vector<16x96xf32> to vector<16x8xf32>
    %54 = vector.extract_strided_slice %45 {offsets = [16, 0], sizes = [16, 16], strides = [1, 1]} : vector<64x16xf32> to vector<16x16xf32>
    %cst_27 = arith.constant dense<0.000000e+00> : vector<16x8xf32>
    %55 = tpu.matmul %54, %53, %cst_27 {dimension_numbers = #tpu.dot_dimension_numbers<[1], [0], [0], [1], [0, 0, 1, 1], [], []>} : vector<16x16xf32>, vector<16x8xf32>, vector<16x8xf32> -> vector<16x8xf32>
    %56 = vector.extract_strided_slice %8 {offsets = [8, 0], sizes = [8, 32], strides = [1, 1]} : vector<32x32xf32> to vector<8x32xf32>
    %cst_28 = arith.constant dense<0.000000e+00> : vector<16x32xf32>
    %57 = tpu.matmul %55, %56, %cst_28 {dimension_numbers = #tpu.dot_dimension_numbers<[1], [0], [0], [1], [0, 0, 1, 1], [], []>} : vector<16x8xf32>, vector<8x32xf32>, vector<16x32xf32> -> vector<16x32xf32>
    %58 = arith.addf %52, %57 : vector<16x32xf32>
    %59 = vector.extract_strided_slice %20 {offsets = [0, 80], sizes = [16, 8], strides = [1, 1]} : vector<16x96xf32> to vector<16x8xf32>
    %60 = vector.extract_strided_slice %45 {offsets = [32, 0], sizes = [16, 16], strides = [1, 1]} : vector<64x16xf32> to vector<16x16xf32>
    %cst_29 = arith.constant dense<0.000000e+00> : vector<16x8xf32>
    %61 = tpu.matmul %60, %59, %cst_29 {dimension_numbers = #tpu.dot_dimension_numbers<[1], [0], [0], [1], [0, 0, 1, 1], [], []>} : vector<16x16xf32>, vector<16x8xf32>, vector<16x8xf32> -> vector<16x8xf32>
    %62 = vector.extract_strided_slice %8 {offsets = [16, 0], sizes = [8, 32], strides = [1, 1]} : vector<32x32xf32> to vector<8x32xf32>
    %cst_30 = arith.constant dense<0.000000e+00> : vector<16x32xf32>
    %63 = tpu.matmul %61, %62, %cst_30 {dimension_numbers = #tpu.dot_dimension_numbers<[1], [0], [0], [1], [0, 0, 1, 1], [], []>} : vector<16x8xf32>, vector<8x32xf32>, vector<16x32xf32> -> vector<16x32xf32>
    %64 = arith.addf %58, %63 : vector<16x32xf32>
    %65 = vector.extract_strided_slice %20 {offsets = [0, 88], sizes = [16, 8], strides = [1, 1]} : vector<16x96xf32> to vector<16x8xf32>
    %66 = vector.extract_strided_slice %45 {offsets = [48, 0], sizes = [16, 16], strides = [1, 1]} : vector<64x16xf32> to vector<16x16xf32>
    %cst_31 = arith.constant dense<0.000000e+00> : vector<16x8xf32>
    %67 = tpu.matmul %66, %65, %cst_31 {dimension_numbers = #tpu.dot_dimension_numbers<[1], [0], [0], [1], [0, 0, 1, 1], [], []>} : vector<16x16xf32>, vector<16x8xf32>, vector<16x8xf32> -> vector<16x8xf32>
    %68 = vector.extract_strided_slice %8 {offsets = [24, 0], sizes = [8, 32], strides = [1, 1]} : vector<32x32xf32> to vector<8x32xf32>
    %cst_32 = arith.constant dense<0.000000e+00> : vector<16x32xf32>
    %69 = tpu.matmul %67, %68, %cst_32 {dimension_numbers = #tpu.dot_dimension_numbers<[1], [0], [0], [1], [0, 0, 1, 1], [], []>} : vector<16x8xf32>, vector<8x32xf32>, vector<16x32xf32> -> vector<16x32xf32>
    %70 = arith.addf %64, %69 : vector<16x32xf32>
    %71 = vector.broadcast %9 : vector<1x32xf32> to vector<16x32xf32>
    %72 = arith.addf %70, %71 : vector<16x32xf32>
    %73 = arith.addf %5, %72 : vector<16x32xf32>
    %cst_33 = arith.constant dense<0.000000e+00> : vector<16xf32>
    %74 = vector.multi_reduction <add>, %73, %cst_33 [1] : vector<16x32xf32> to vector<16xf32>
    %75 = vector.shape_cast %74 : vector<16xf32> to vector<16x1xf32>
    %cst_34 = arith.constant 3.200000e+01 : f32
    %76 = vector.broadcast %cst_34 : f32 to vector<16x1xf32>
    %77 = arith.divf %75, %76 : vector<16x1xf32>
    %78 = vector.broadcast %77 : vector<16x1xf32> to vector<16x32xf32>
    %79 = arith.subf %73, %78 : vector<16x32xf32>
    %80 = arith.mulf %79, %79 : vector<16x32xf32>
    %cst_35 = arith.constant dense<0.000000e+00> : vector<16xf32>
    %81 = vector.multi_reduction <add>, %80, %cst_35 [1] : vector<16x32xf32> to vector<16xf32>
    %82 = vector.shape_cast %81 : vector<16xf32> to vector<16x1xf32>
    %cst_36 = arith.constant 3.200000e+01 : f32
    %83 = vector.broadcast %cst_36 : f32 to vector<16x1xf32>
    %84 = arith.divf %82, %83 : vector<16x1xf32>
    %85 = vector.broadcast %77 : vector<16x1xf32> to vector<16x32xf32>
    %86 = arith.subf %73, %85 : vector<16x32xf32>
    %cst_37 = arith.constant 9.99999974E-6 : f32
    %87 = vector.broadcast %cst_37 : f32 to vector<16x1xf32>
    %88 = arith.addf %84, %87 : vector<16x1xf32>
    %89 = math.rsqrt %88 : vector<16x1xf32>
    %90 = vector.broadcast %89 : vector<16x1xf32> to vector<16x32xf32>
    %91 = arith.mulf %86, %90 : vector<16x32xf32>
    %92 = vector.broadcast %10 : vector<1x32xf32> to vector<16x32xf32>
    %93 = arith.mulf %91, %92 : vector<16x32xf32>
    %94 = vector.broadcast %11 : vector<1x32xf32> to vector<16x32xf32>
    %95 = arith.addf %93, %94 : vector<16x32xf32>
    %cst_38 = arith.constant dense<0.000000e+00> : vector<16x128xf32>
    %96 = tpu.matmul %95, %12, %cst_38 {dimension_numbers = #tpu.dot_dimension_numbers<[1], [0], [0], [1], [0, 0, 1, 1], [], []>} : vector<16x32xf32>, vector<32x128xf32>, vector<16x128xf32> -> vector<16x128xf32>
    %97 = vector.broadcast %13 : vector<1x128xf32> to vector<16x128xf32>
    %98 = arith.addf %96, %97 : vector<16x128xf32>
    %cst_39 = arith.constant 0.000000e+00 : f32
    %99 = vector.broadcast %cst_39 : f32 to vector<16x128xf32>
    %100 = arith.maximumf %98, %99 : vector<16x128xf32>
    %cst_40 = arith.constant dense<0.000000e+00> : vector<16x32xf32>
    %101 = tpu.matmul %100, %14, %cst_40 {dimension_numbers = #tpu.dot_dimension_numbers<[1], [0], [0], [1], [0, 0, 1, 1], [], []>} : vector<16x128xf32>, vector<128x32xf32>, vector<16x32xf32> -> vector<16x32xf32>
    %102 = vector.broadcast %15 : vector<1x32xf32> to vector<16x32xf32>
    %103 = arith.addf %101, %102 : vector<16x32xf32>
    %104 = arith.addf %95, %103 : vector<16x32xf32>
    %cst_41 = arith.constant dense<0.000000e+00> : vector<16xf32>
    %105 = vector.multi_reduction <add>, %104, %cst_41 [1] : vector<16x32xf32> to vector<16xf32>
    %106 = vector.shape_cast %105 : vector<16xf32> to vector<16x1xf32>
    %cst_42 = arith.constant 3.200000e+01 : f32
    %107 = vector.broadcast %cst_42 : f32 to vector<16x1xf32>
    %108 = arith.divf %106, %107 : vector<16x1xf32>
    %109 = vector.broadcast %108 : vector<16x1xf32> to vector<16x32xf32>
    %110 = arith.subf %104, %109 : vector<16x32xf32>
    %111 = arith.mulf %110, %110 : vector<16x32xf32>
    %cst_43 = arith.constant dense<0.000000e+00> : vector<16xf32>
    %112 = vector.multi_reduction <add>, %111, %cst_43 [1] : vector<16x32xf32> to vector<16xf32>
    %113 = vector.shape_cast %112 : vector<16xf32> to vector<16x1xf32>
    %cst_44 = arith.constant 3.200000e+01 : f32
    %114 = vector.broadcast %cst_44 : f32 to vector<16x1xf32>
    %115 = arith.divf %113, %114 : vector<16x1xf32>
    %116 = vector.broadcast %108 : vector<16x1xf32> to vector<16x32xf32>
    %117 = arith.subf %104, %116 : vector<16x32xf32>
    %cst_45 = arith.constant 9.99999974E-6 : f32
    %118 = vector.broadcast %cst_45 : f32 to vector<16x1xf32>
    %119 = arith.addf %115, %118 : vector<16x1xf32>
    %120 = math.rsqrt %119 : vector<16x1xf32>
    %121 = vector.broadcast %120 : vector<16x1xf32> to vector<16x32xf32>
    %122 = arith.mulf %117, %121 : vector<16x32xf32>
    %123 = vector.broadcast %16 : vector<1x32xf32> to vector<16x32xf32>
    %124 = arith.mulf %122, %123 : vector<16x32xf32>
    %125 = vector.broadcast %17 : vector<1x32xf32> to vector<16x32xf32>
    %126 = arith.addf %124, %125 : vector<16x32xf32>
    %c368 = arith.constant 368 : index
    %c0_46 = arith.constant 0 : index
    %127 = vector.load %arg1[%c368, %c0_46] : memref<656x128xf32, #tpu.memory_space<vmem>>, vector<32x96xf32>
    %c400 = arith.constant 400 : index
    %c0_47 = arith.constant 0 : index
    %128 = vector.load %arg1[%c400, %c0_47] : memref<656x128xf32, #tpu.memory_space<vmem>>, vector<1x96xf32>
    %c408 = arith.constant 408 : index
    %c0_48 = arith.constant 0 : index
    %129 = vector.load %arg1[%c408, %c0_48] : memref<656x128xf32, #tpu.memory_space<vmem>>, vector<32x32xf32>
    %c440 = arith.constant 440 : index
    %c0_49 = arith.constant 0 : index
    %130 = vector.load %arg1[%c440, %c0_49] : memref<656x128xf32, #tpu.memory_space<vmem>>, vector<1x32xf32>
    %c448 = arith.constant 448 : index
    %c0_50 = arith.constant 0 : index
    %131 = vector.load %arg1[%c448, %c0_50] : memref<656x128xf32, #tpu.memory_space<vmem>>, vector<1x32xf32>
    %c456 = arith.constant 456 : index
    %c0_51 = arith.constant 0 : index
    %132 = vector.load %arg1[%c456, %c0_51] : memref<656x128xf32, #tpu.memory_space<vmem>>, vector<1x32xf32>
    %c464 = arith.constant 464 : index
    %c0_52 = arith.constant 0 : index
    %133 = vector.load %arg1[%c464, %c0_52] : memref<656x128xf32, #tpu.memory_space<vmem>>, vector<32x128xf32>
    %c496 = arith.constant 496 : index
    %c0_53 = arith.constant 0 : index
    %134 = vector.load %arg1[%c496, %c0_53] : memref<656x128xf32, #tpu.memory_space<vmem>>, vector<1x128xf32>
    %c504 = arith.constant 504 : index
    %c0_54 = arith.constant 0 : index
    %135 = vector.load %arg1[%c504, %c0_54] : memref<656x128xf32, #tpu.memory_space<vmem>>, vector<128x32xf32>
    %c632 = arith.constant 632 : index
    %c0_55 = arith.constant 0 : index
    %136 = vector.load %arg1[%c632, %c0_55] : memref<656x128xf32, #tpu.memory_space<vmem>>, vector<1x32xf32>
    %c640 = arith.constant 640 : index
    %c0_56 = arith.constant 0 : index
    %137 = vector.load %arg1[%c640, %c0_56] : memref<656x128xf32, #tpu.memory_space<vmem>>, vector<1x32xf32>
    %c648 = arith.constant 648 : index
    %c0_57 = arith.constant 0 : index
    %138 = vector.load %arg1[%c648, %c0_57] : memref<656x128xf32, #tpu.memory_space<vmem>>, vector<1x32xf32>
    %cst_58 = arith.constant dense<0.000000e+00> : vector<16x96xf32>
    %139 = tpu.matmul %126, %127, %cst_58 {dimension_numbers = #tpu.dot_dimension_numbers<[1], [0], [0], [1], [0, 0, 1, 1], [], []>} : vector<16x32xf32>, vector<32x96xf32>, vector<16x96xf32> -> vector<16x96xf32>
    %140 = vector.broadcast %128 : vector<1x96xf32> to vector<16x96xf32>
    %141 = arith.addf %139, %140 : vector<16x96xf32>
    %142 = vector.extract_strided_slice %141 {offsets = [0, 0], sizes = [16, 8], strides = [1, 1]} : vector<16x96xf32> to vector<16x8xf32>
    %143 = vector.extract_strided_slice %141 {offsets = [0, 32], sizes = [16, 8], strides = [1, 1]} : vector<16x96xf32> to vector<16x8xf32>
    %cst_59 = arith.constant dense<0.000000e+00> : vector<16x16xf32>
    %144 = tpu.matmul %142, %143, %cst_59 {dimension_numbers = #tpu.dot_dimension_numbers<[1], [1], [0], [0], [0, 0, 1, 0], [], []>} : vector<16x8xf32>, vector<16x8xf32>, vector<16x16xf32> -> vector<16x16xf32>
    %145 = vector.extract_strided_slice %141 {offsets = [0, 8], sizes = [16, 8], strides = [1, 1]} : vector<16x96xf32> to vector<16x8xf32>
    %146 = vector.extract_strided_slice %141 {offsets = [0, 40], sizes = [16, 8], strides = [1, 1]} : vector<16x96xf32> to vector<16x8xf32>
    %cst_60 = arith.constant dense<0.000000e+00> : vector<16x16xf32>
    %147 = tpu.matmul %145, %146, %cst_60 {dimension_numbers = #tpu.dot_dimension_numbers<[1], [1], [0], [0], [0, 0, 1, 0], [], []>} : vector<16x8xf32>, vector<16x8xf32>, vector<16x16xf32> -> vector<16x16xf32>
    %148 = vector.extract_strided_slice %141 {offsets = [0, 16], sizes = [16, 8], strides = [1, 1]} : vector<16x96xf32> to vector<16x8xf32>
    %149 = vector.extract_strided_slice %141 {offsets = [0, 48], sizes = [16, 8], strides = [1, 1]} : vector<16x96xf32> to vector<16x8xf32>
    %cst_61 = arith.constant dense<0.000000e+00> : vector<16x16xf32>
    %150 = tpu.matmul %148, %149, %cst_61 {dimension_numbers = #tpu.dot_dimension_numbers<[1], [1], [0], [0], [0, 0, 1, 0], [], []>} : vector<16x8xf32>, vector<16x8xf32>, vector<16x16xf32> -> vector<16x16xf32>
    %151 = vector.extract_strided_slice %141 {offsets = [0, 24], sizes = [16, 8], strides = [1, 1]} : vector<16x96xf32> to vector<16x8xf32>
    %152 = vector.extract_strided_slice %141 {offsets = [0, 56], sizes = [16, 8], strides = [1, 1]} : vector<16x96xf32> to vector<16x8xf32>
    %cst_62 = arith.constant dense<0.000000e+00> : vector<16x16xf32>
    %153 = tpu.matmul %151, %152, %cst_62 {dimension_numbers = #tpu.dot_dimension_numbers<[1], [1], [0], [0], [0, 0, 1, 0], [], []>} : vector<16x8xf32>, vector<16x8xf32>, vector<16x16xf32> -> vector<16x16xf32>
    %154 = tpu.concatenate %144, %147, %150, %153 in 0 : vector<16x16xf32>, vector<16x16xf32>, vector<16x16xf32>, vector<16x16xf32> -> vector<64x16xf32>
    %cst_63 = arith.constant 0.353553385 : f32
    %155 = vector.broadcast %cst_63 : f32 to vector<64x16xf32>
    %156 = arith.mulf %154, %155 : vector<64x16xf32>
    %157 = arith.addf %156, %1 : vector<64x16xf32>
    %cst_64 = arith.constant dense<0xFF800000> : vector<64xf32>
    %158 = vector.multi_reduction <maximumf>, %157, %cst_64 [1] : vector<64x16xf32> to vector<64xf32>
    %159 = vector.shape_cast %158 : vector<64xf32> to vector<64x1xf32>
    %160 = vector.broadcast %159 : vector<64x1xf32> to vector<64x16xf32>
    %161 = arith.subf %157, %160 : vector<64x16xf32>
    %162 = math.exp %161 : vector<64x16xf32>
    %cst_65 = arith.constant dense<0.000000e+00> : vector<64xf32>
    %163 = vector.multi_reduction <add>, %162, %cst_65 [1] : vector<64x16xf32> to vector<64xf32>
    %164 = vector.shape_cast %163 : vector<64xf32> to vector<64x1xf32>
    %165 = vector.broadcast %164 : vector<64x1xf32> to vector<64x16xf32>
    %166 = arith.divf %162, %165 : vector<64x16xf32>
    %cst_66 = arith.constant 0.000000e+00 : f32
    %167 = vector.broadcast %cst_66 : f32 to vector<16x32xf32>
    %168 = vector.extract_strided_slice %141 {offsets = [0, 64], sizes = [16, 8], strides = [1, 1]} : vector<16x96xf32> to vector<16x8xf32>
    %169 = vector.extract_strided_slice %166 {offsets = [0, 0], sizes = [16, 16], strides = [1, 1]} : vector<64x16xf32> to vector<16x16xf32>
    %cst_67 = arith.constant dense<0.000000e+00> : vector<16x8xf32>
    %170 = tpu.matmul %169, %168, %cst_67 {dimension_numbers = #tpu.dot_dimension_numbers<[1], [0], [0], [1], [0, 0, 1, 1], [], []>} : vector<16x16xf32>, vector<16x8xf32>, vector<16x8xf32> -> vector<16x8xf32>
    %171 = vector.extract_strided_slice %129 {offsets = [0, 0], sizes = [8, 32], strides = [1, 1]} : vector<32x32xf32> to vector<8x32xf32>
    %cst_68 = arith.constant dense<0.000000e+00> : vector<16x32xf32>
    %172 = tpu.matmul %170, %171, %cst_68 {dimension_numbers = #tpu.dot_dimension_numbers<[1], [0], [0], [1], [0, 0, 1, 1], [], []>} : vector<16x8xf32>, vector<8x32xf32>, vector<16x32xf32> -> vector<16x32xf32>
    %173 = arith.addf %167, %172 : vector<16x32xf32>
    %174 = vector.extract_strided_slice %141 {offsets = [0, 72], sizes = [16, 8], strides = [1, 1]} : vector<16x96xf32> to vector<16x8xf32>
    %175 = vector.extract_strided_slice %166 {offsets = [16, 0], sizes = [16, 16], strides = [1, 1]} : vector<64x16xf32> to vector<16x16xf32>
    %cst_69 = arith.constant dense<0.000000e+00> : vector<16x8xf32>
    %176 = tpu.matmul %175, %174, %cst_69 {dimension_numbers = #tpu.dot_dimension_numbers<[1], [0], [0], [1], [0, 0, 1, 1], [], []>} : vector<16x16xf32>, vector<16x8xf32>, vector<16x8xf32> -> vector<16x8xf32>
    %177 = vector.extract_strided_slice %129 {offsets = [8, 0], sizes = [8, 32], strides = [1, 1]} : vector<32x32xf32> to vector<8x32xf32>
    %cst_70 = arith.constant dense<0.000000e+00> : vector<16x32xf32>
    %178 = tpu.matmul %176, %177, %cst_70 {dimension_numbers = #tpu.dot_dimension_numbers<[1], [0], [0], [1], [0, 0, 1, 1], [], []>} : vector<16x8xf32>, vector<8x32xf32>, vector<16x32xf32> -> vector<16x32xf32>
    %179 = arith.addf %173, %178 : vector<16x32xf32>
    %180 = vector.extract_strided_slice %141 {offsets = [0, 80], sizes = [16, 8], strides = [1, 1]} : vector<16x96xf32> to vector<16x8xf32>
    %181 = vector.extract_strided_slice %166 {offsets = [32, 0], sizes = [16, 16], strides = [1, 1]} : vector<64x16xf32> to vector<16x16xf32>
    %cst_71 = arith.constant dense<0.000000e+00> : vector<16x8xf32>
    %182 = tpu.matmul %181, %180, %cst_71 {dimension_numbers = #tpu.dot_dimension_numbers<[1], [0], [0], [1], [0, 0, 1, 1], [], []>} : vector<16x16xf32>, vector<16x8xf32>, vector<16x8xf32> -> vector<16x8xf32>
    %183 = vector.extract_strided_slice %129 {offsets = [16, 0], sizes = [8, 32], strides = [1, 1]} : vector<32x32xf32> to vector<8x32xf32>
    %cst_72 = arith.constant dense<0.000000e+00> : vector<16x32xf32>
    %184 = tpu.matmul %182, %183, %cst_72 {dimension_numbers = #tpu.dot_dimension_numbers<[1], [0], [0], [1], [0, 0, 1, 1], [], []>} : vector<16x8xf32>, vector<8x32xf32>, vector<16x32xf32> -> vector<16x32xf32>
    %185 = arith.addf %179, %184 : vector<16x32xf32>
    %186 = vector.extract_strided_slice %141 {offsets = [0, 88], sizes = [16, 8], strides = [1, 1]} : vector<16x96xf32> to vector<16x8xf32>
    %187 = vector.extract_strided_slice %166 {offsets = [48, 0], sizes = [16, 16], strides = [1, 1]} : vector<64x16xf32> to vector<16x16xf32>
    %cst_73 = arith.constant dense<0.000000e+00> : vector<16x8xf32>
    %188 = tpu.matmul %187, %186, %cst_73 {dimension_numbers = #tpu.dot_dimension_numbers<[1], [0], [0], [1], [0, 0, 1, 1], [], []>} : vector<16x16xf32>, vector<16x8xf32>, vector<16x8xf32> -> vector<16x8xf32>
    %189 = vector.extract_strided_slice %129 {offsets = [24, 0], sizes = [8, 32], strides = [1, 1]} : vector<32x32xf32> to vector<8x32xf32>
    %cst_74 = arith.constant dense<0.000000e+00> : vector<16x32xf32>
    %190 = tpu.matmul %188, %189, %cst_74 {dimension_numbers = #tpu.dot_dimension_numbers<[1], [0], [0], [1], [0, 0, 1, 1], [], []>} : vector<16x8xf32>, vector<8x32xf32>, vector<16x32xf32> -> vector<16x32xf32>
    %191 = arith.addf %185, %190 : vector<16x32xf32>
    %192 = vector.broadcast %130 : vector<1x32xf32> to vector<16x32xf32>
    %193 = arith.addf %191, %192 : vector<16x32xf32>
    %194 = arith.addf %126, %193 : vector<16x32xf32>
    %cst_75 = arith.constant dense<0.000000e+00> : vector<16xf32>
    %195 = vector.multi_reduction <add>, %194, %cst_75 [1] : vector<16x32xf32> to vector<16xf32>
    %196 = vector.shape_cast %195 : vector<16xf32> to vector<16x1xf32>
    %cst_76 = arith.constant 3.200000e+01 : f32
    %197 = vector.broadcast %cst_76 : f32 to vector<16x1xf32>
    %198 = arith.divf %196, %197 : vector<16x1xf32>
    %199 = vector.broadcast %198 : vector<16x1xf32> to vector<16x32xf32>
    %200 = arith.subf %194, %199 : vector<16x32xf32>
    %201 = arith.mulf %200, %200 : vector<16x32xf32>
    %cst_77 = arith.constant dense<0.000000e+00> : vector<16xf32>
    %202 = vector.multi_reduction <add>, %201, %cst_77 [1] : vector<16x32xf32> to vector<16xf32>
    %203 = vector.shape_cast %202 : vector<16xf32> to vector<16x1xf32>
    %cst_78 = arith.constant 3.200000e+01 : f32
    %204 = vector.broadcast %cst_78 : f32 to vector<16x1xf32>
    %205 = arith.divf %203, %204 : vector<16x1xf32>
    %206 = vector.broadcast %198 : vector<16x1xf32> to vector<16x32xf32>
    %207 = arith.subf %194, %206 : vector<16x32xf32>
    %cst_79 = arith.constant 9.99999974E-6 : f32
    %208 = vector.broadcast %cst_79 : f32 to vector<16x1xf32>
    %209 = arith.addf %205, %208 : vector<16x1xf32>
    %210 = math.rsqrt %209 : vector<16x1xf32>
    %211 = vector.broadcast %210 : vector<16x1xf32> to vector<16x32xf32>
    %212 = arith.mulf %207, %211 : vector<16x32xf32>
    %213 = vector.broadcast %131 : vector<1x32xf32> to vector<16x32xf32>
    %214 = arith.mulf %212, %213 : vector<16x32xf32>
    %215 = vector.broadcast %132 : vector<1x32xf32> to vector<16x32xf32>
    %216 = arith.addf %214, %215 : vector<16x32xf32>
    %cst_80 = arith.constant dense<0.000000e+00> : vector<16x128xf32>
    %217 = tpu.matmul %216, %133, %cst_80 {dimension_numbers = #tpu.dot_dimension_numbers<[1], [0], [0], [1], [0, 0, 1, 1], [], []>} : vector<16x32xf32>, vector<32x128xf32>, vector<16x128xf32> -> vector<16x128xf32>
    %218 = vector.broadcast %134 : vector<1x128xf32> to vector<16x128xf32>
    %219 = arith.addf %217, %218 : vector<16x128xf32>
    %cst_81 = arith.constant 0.000000e+00 : f32
    %220 = vector.broadcast %cst_81 : f32 to vector<16x128xf32>
    %221 = arith.maximumf %219, %220 : vector<16x128xf32>
    %cst_82 = arith.constant dense<0.000000e+00> : vector<16x32xf32>
    %222 = tpu.matmul %221, %135, %cst_82 {dimension_numbers = #tpu.dot_dimension_numbers<[1], [0], [0], [1], [0, 0, 1, 1], [], []>} : vector<16x128xf32>, vector<128x32xf32>, vector<16x32xf32> -> vector<16x32xf32>
    %223 = vector.broadcast %136 : vector<1x32xf32> to vector<16x32xf32>
    %224 = arith.addf %222, %223 : vector<16x32xf32>
    %225 = arith.addf %216, %224 : vector<16x32xf32>
    %cst_83 = arith.constant dense<0.000000e+00> : vector<16xf32>
    %226 = vector.multi_reduction <add>, %225, %cst_83 [1] : vector<16x32xf32> to vector<16xf32>
    %227 = vector.shape_cast %226 : vector<16xf32> to vector<16x1xf32>
    %cst_84 = arith.constant 3.200000e+01 : f32
    %228 = vector.broadcast %cst_84 : f32 to vector<16x1xf32>
    %229 = arith.divf %227, %228 : vector<16x1xf32>
    %230 = vector.broadcast %229 : vector<16x1xf32> to vector<16x32xf32>
    %231 = arith.subf %225, %230 : vector<16x32xf32>
    %232 = arith.mulf %231, %231 : vector<16x32xf32>
    %cst_85 = arith.constant dense<0.000000e+00> : vector<16xf32>
    %233 = vector.multi_reduction <add>, %232, %cst_85 [1] : vector<16x32xf32> to vector<16xf32>
    %234 = vector.shape_cast %233 : vector<16xf32> to vector<16x1xf32>
    %cst_86 = arith.constant 3.200000e+01 : f32
    %235 = vector.broadcast %cst_86 : f32 to vector<16x1xf32>
    %236 = arith.divf %234, %235 : vector<16x1xf32>
    %237 = vector.broadcast %229 : vector<16x1xf32> to vector<16x32xf32>
    %238 = arith.subf %225, %237 : vector<16x32xf32>
    %cst_87 = arith.constant 9.99999974E-6 : f32
    %239 = vector.broadcast %cst_87 : f32 to vector<16x1xf32>
    %240 = arith.addf %236, %239 : vector<16x1xf32>
    %241 = math.rsqrt %240 : vector<16x1xf32>
    %242 = vector.broadcast %241 : vector<16x1xf32> to vector<16x32xf32>
    %243 = arith.mulf %238, %242 : vector<16x32xf32>
    %244 = vector.broadcast %137 : vector<1x32xf32> to vector<16x32xf32>
    %245 = arith.mulf %243, %244 : vector<16x32xf32>
    %246 = vector.broadcast %138 : vector<1x32xf32> to vector<16x32xf32>
    %247 = arith.addf %245, %246 : vector<16x32xf32>
    %248 = tpu.transpose %247, [1, 0] : vector<16x32xf32> -> vector<32x16xf32>
    %249 = vector.extract_strided_slice %248 {offsets = [0, 0], sizes = [32, 8], strides = [1, 1]} : vector<32x16xf32> to vector<32x8xf32>
    %c0_88 = arith.constant 0 : index
    %c0_89 = arith.constant 0 : index
    %c0_90 = arith.constant 0 : index
    %250 = vector.load %arg2[%c0_88, %c0_89, %c0_90] : memref<2x32x8xf32, #tpu.memory_space<vmem>>, vector<1x32x8xf32>
    %251 = vector.shape_cast %250 : vector<1x32x8xf32> to vector<32x8xf32>
    %252 = vector.shape_cast %249 : vector<32x8xf32> to vector<1x32x8xf32>
    tpu.vector_store %arg2[%c0_88, %c0_89, %c0_90], %252 {strides = array<i32>} : memref<2x32x8xf32, #tpu.memory_space<vmem>>, vector<1x32x8xf32>,
    %253 = vector.extract_strided_slice %248 {offsets = [0, 8], sizes = [32, 8], strides = [1, 1]} : vector<32x16xf32> to vector<32x8xf32>
    %c1 = arith.constant 1 : index
    %c0_91 = arith.constant 0 : index
    %c0_92 = arith.constant 0 : index
    %254 = vector.load %arg2[%c1, %c0_91, %c0_92] : memref<2x32x8xf32, #tpu.memory_space<vmem>>, vector<1x32x8xf32>
    %255 = vector.shape_cast %254 : vector<1x32x8xf32> to vector<32x8xf32>
    %256 = vector.shape_cast %253 : vector<32x8xf32> to vector<1x32x8xf32>
    tpu.vector_store %arg2[%c1, %c0_91, %c0_92], %256 {strides = array<i32>} : memref<2x32x8xf32, #tpu.memory_space<vmem>>, vector<1x32x8xf32>,
    return
  }
}

</mosaic_0001>

<llo_original>
// kernel: _lambda_.1
$region0: #{_lambda_.1}
  #allocation0 [shape = 'u32[]', space=smem, size = 0x4, offset = 0x4, fixed_abs, tag = 'smem constant byte address 0x4 - core index']
  #allocation1 [shape = 'u32[72,128]{1,0:T(1,128)}', space=vmem, size = 0x9000, scoped, tag = 'internal scratch']
  %s0 = inlined_call_operand.vmem [shape: f32[2,32,8], index: 0, kind: input, shape index: {}]
  %s1 = inlined_call_operand.hbm [shape: f32[656,128], index: 1, kind: input, shape index: {}]
  %s2 = inlined_call_operand.vmem [shape: f32[2,32,8], index: 2, kind: output, shape index: {}]
  %s3 = sld [smem:[#allocation0]]
  $region22: #{_lambda_.1} parent=0
    _
  %s5 = ssub.s32 1, %s3
  %s6 = scalar_select 0, %s5, %s3
  $region1: #{_lambda_.1} parent=0
    #allocation2 [shape = 'u8[335872]{0}', space=vmem, size = 0x52000, scoped, tag = 'input window, operand 1, single buffered']
    #allocation3 [shape = 's32[1]{0}', space=sflag, size = 0x4, scoped, tag = 'scoped memory for _lambda_.1']
    %7 = vsyncpa [#allocation3], 0
    // Predicated region
    $region2: #{_lambda_.1} parent=1 // pred_check
      _
    $region3: #{_lambda_.1} parent=1 // pred_check_branch
      %9 = sbr.rel (0) target = $region5
    $region4: #{_lambda_.1} parent=1 // pred_region
      _
    $region5: #{_lambda_.1} parent=1 // pred_fallthru
      _
    // Predicated region
    $region6: #{_lambda_.1} parent=1 // pred_check
      _
    $region7: #{_lambda_.1} parent=1 // pred_check_branch
      %11 = sbr.rel (0) target = $region9
    $region8: #{_lambda_.1} parent=1 // pred_region
      %13 = vsyncadd [#allocation3], 0
      %s14 = sshll.u32 %s1, 4
      %s15 = int_to_ptr.hbm [resolvable:$true] %s14
      %s16 = sshll.u32 [#allocation2], 4
      %s17 = int_to_ptr.vmem [resolvable:$true] %s16
      %22 = dma.hbm_to_vmem [thread:$0]  %s15, 10496, %s17, [#allocation3], 128, 128, 8
    $region9: #{_lambda_.1} parent=1 // pred_fallthru
      _
    // Predicated region
    $region10: #{_lambda_.1} parent=1 // pred_check
      _
    $region11: #{_lambda_.1} parent=1 // pred_check_branch
      %24 = sbr.rel (0) target = $region13
    $region12: #{_lambda_.1} parent=1 // pred_region
      %26 = dma.done [#allocation3], 10496
    $region13: #{_lambda_.1} parent=1 // pred_fallthru
      _
    %v27 = vld [vmem:[#allocation2] sm:$0xff]
    %v28 = vld [vmem:[#allocation2 + $0x8] sm:$0xff]
    %v29 = vld [vmem:[#allocation2 + $0x10] sm:$0xff]
    %v30 = vld [vmem:[#allocation2 + $0x18] sm:$0xff]
    %v31 = vld [vmem:[#allocation2 + $0x20] sm:$0xff]
    %v32 = vld [vmem:[#allocation2 + $0x28] sm:$0xff]
    %v33 = vld [vmem:[#allocation2 + $0x30] sm:$0xff]
    %v34 = vld [vmem:[#allocation2 + $0x38] sm:$0xff]
    %v35 = vld [vmem:[#allocation2 + $0x40] sm:$0xff]
    %v36 = vld [vmem:[#allocation2 + $0x48] sm:$0xff]
    %v37 = vld [vmem:[%s0] sm:$0xff]
    %v38 = vld [vmem:[%s0 + $0x8] sm:$0xff]
    %v39 = vld [vmem:[%s0 + $0x10] sm:$0xff]
    %v40 = vld [vmem:[%s0 + $0x18] sm:$0xff]
    %v41 = vld [vmem:[%s0 + $0x20] sm:$0xff]
    %v42 = vld [vmem:[%s0 + $0x28] sm:$0xff]
    %v43 = vld [vmem:[%s0 + $0x30] sm:$0xff]
    %v44 = vld [vmem:[%s0 + $0x38] sm:$0xff]
    %45 = vxpose.xlu0.b32.start [1/16] %v37, 128
    %46 = vxpose.xlu0.b32.cont [2/16] %v38, 128
    %47 = vxpose.xlu0.b32.cont [3/16] %v39, 128
    %48 = vxpose.xlu0.b32.cont [4/16] %v40, 128
    %49 = vxpose.xlu0.b32.cont [5/16] 0.0, 128
    %50 = vxpose.xlu0.b32.cont [6/16] 0.0, 128
    %51 = vxpose.xlu0.b32.cont [7/16] 0.0, 128
    %52 = vxpose.xlu0.b32.cont [8/16] 0.0, 128
    %53 = vxpose.xlu0.b32.cont [9/16] 0.0, 128
    %54 = vxpose.xlu0.b32.cont [10/16] 0.0, 128
    %55 = vxpose.xlu0.b32.cont [11/16] 0.0, 128
    %56 = vxpose.xlu0.b32.cont [12/16] 0.0, 128
    %57 = vxpose.xlu0.b32.cont [13/16] 0.0, 128
    %58 = vxpose.xlu0.b32.cont [14/16] 0.0, 128
    %59 = vxpose.xlu0.b32.cont [15/16] 0.0, 128
    %60 = vxpose.xlu0.b32.end [16/16] 0.0, 128
    %v61 = vpop.trf.xlu0
    %v62 = vpop.trf.xlu0
    %v63 = vpop.trf.xlu0
    %v64 = vpop.trf.xlu0
    %v65 = vpop.trf.xlu0
    %v66 = vpop.trf.xlu0
    %v67 = vpop.trf.xlu0
    %v68 = vpop.trf.xlu0
    %v69 = vpop.trf.xlu0
    %v70 = vpop.trf.xlu0
    %v71 = vpop.trf.xlu0
    %v72 = vpop.trf.xlu0
    %v73 = vpop.trf.xlu0
    %v74 = vpop.trf.xlu0
    %v75 = vpop.trf.xlu0
    %v76 = vpop.trf.xlu0
    %77 = vxpose.xlu0.b32.start [1/16] %v41, 128
    %78 = vxpose.xlu0.b32.cont [2/16] %v42, 128
    %79 = vxpose.xlu0.b32.cont [3/16] %v43, 128
    %80 = vxpose.xlu0.b32.cont [4/16] %v44, 128
    %81 = vxpose.xlu0.b32.cont [5/16] 0.0, 128
    %82 = vxpose.xlu0.b32.cont [6/16] 0.0, 128
    %83 = vxpose.xlu0.b32.cont [7/16] 0.0, 128
    %84 = vxpose.xlu0.b32.cont [8/16] 0.0, 128
    %85 = vxpose.xlu0.b32.cont [9/16] 0.0, 128
    %86 = vxpose.xlu0.b32.cont [10/16] 0.0, 128
    %87 = vxpose.xlu0.b32.cont [11/16] 0.0, 128
    %88 = vxpose.xlu0.b32.cont [12/16] 0.0, 128
    %89 = vxpose.xlu0.b32.cont [13/16] 0.0, 128
    %90 = vxpose.xlu0.b32.cont [14/16] 0.0, 128
    %91 = vxpose.xlu0.b32.cont [15/16] 0.0, 128
    %92 = vxpose.xlu0.b32.end [16/16] 0.0, 128
    %v93 = vpop.trf.xlu0
    %v94 = vpop.trf.xlu0
    %v95 = vpop.trf.xlu0
    %v96 = vpop.trf.xlu0
    %v97 = vpop.trf.xlu0
    %v98 = vpop.trf.xlu0
    %v99 = vpop.trf.xlu0
    %v100 = vpop.trf.xlu0
    %v101 = vpop.trf.xlu0
    %v102 = vpop.trf.xlu0
    %v103 = vpop.trf.xlu0
    %v104 = vpop.trf.xlu0
    %v105 = vpop.trf.xlu0
    %v106 = vpop.trf.xlu0
    %v107 = vpop.trf.xlu0
    %v108 = vpop.trf.xlu0
    %v109 = vadd.f32 %v61, %v27
    %v110 = vadd.f32 %v93, %v28
    %v111 = vld [vmem:[#allocation2 + $0x50] sm:$0xff]
    %v112 = vld [vmem:[#allocation2 + $0x58] sm:$0xff]
    %v113 = vld [vmem:[#allocation2 + $0x60] sm:$0xff]
    %v114 = vld [vmem:[#allocation2 + $0x68] sm:$0xff]
    %v115 = vld [vmem:[#allocation2 + $0x70] sm:$0x1]
    %v116 = vld [vmem:[#allocation2 + $0x78] sm:$0xff]
    %v117 = vld [vmem:[#allocation2 + $0x80] sm:$0xff]
    %v118 = vld [vmem:[#allocation2 + $0x88] sm:$0xff]
    %v119 = vld [vmem:[#allocation2 + $0x90] sm:$0xff]
    %v120 = vld [vmem:[#allocation2 + $0x98] sm:$0x1]
    %v121 = vld [vmem:[#allocation2 + $0xa0] sm:$0x1]
    %v122 = vld [vmem:[#allocation2 + $0xa8] sm:$0x1]
    %v123 = vld [vmem:[#allocation2 + $0xb0] sm:$0xff]
    %v124 = vld [vmem:[#allocation2 + $0xb8] sm:$0xff]
    %v125 = vld [vmem:[#allocation2 + $0xc0] sm:$0xff]
    %v126 = vld [vmem:[#allocation2 + $0xc8] sm:$0xff]
    %v127 = vld [vmem:[#allocation2 + $0xd0] sm:$0x1]
    %v128 = vld [vmem:[#allocation2 + $0xd8] sm:$0xff]
    %v129 = vld [vmem:[#allocation2 + $0xe0] sm:$0xff]
    %v130 = vld [vmem:[#allocation2 + $0xe8] sm:$0xff]
    %v131 = vld [vmem:[#allocation2 + $0xf0] sm:$0xff]
    %v132 = vld [vmem:[#allocation2 + $0xf8] sm:$0xff]
    %v133 = vld [vmem:[#allocation2 + $0x100] sm:$0xff]
    %v134 = vld [vmem:[#allocation2 + $0x108] sm:$0xff]
    %v135 = vld [vmem:[#allocation2 + $0x110] sm:$0xff]
    %v136 = vld [vmem:[#allocation2 + $0x118] sm:$0xff]
    %v137 = vld [vmem:[#allocation2 + $0x120] sm:$0xff]
    %v138 = vld [vmem:[#allocation2 + $0x128] sm:$0xff]
    %v139 = vld [vmem:[#allocation2 + $0x130] sm:$0xff]
    %v140 = vld [vmem:[#allocation2 + $0x138] sm:$0xff]
    %v141 = vld [vmem:[#allocation2 + $0x140] sm:$0xff]
    %v142 = vld [vmem:[#allocation2 + $0x148] sm:$0xff]
    %v143 = vld [vmem:[#allocation2 + $0x150] sm:$0xff]
    %v144 = vld [vmem:[#allocation2 + $0x158] sm:$0x1]
    %v145 = vld [vmem:[#allocation2 + $0x160] sm:$0x1]
    %v146 = vld [vmem:[#allocation2 + $0x168] sm:$0x1]
    %v147 = vperm.slane %v115, 0
    %vm148 = vcmask 261120
    %v150 = vsel %vm148, %v109, 0
    %v153 = vsel %vm148, %v110, 0
    %155 = vmatpush.msra.mxu0 0.0
    %156 = vmatpush.msra.mxu0 0.0
    %157 = vmatpush.msra.mxu0 0.0
    %158 = vmatpush.msra.mxu0 0.0
    %159 = vmatpush.msra.mxu0 0.0
    %160 = vmatpush.msra.mxu0 0.0
    %161 = vmatpush.msra.mxu0 0.0
    %162 = vmatpush.msra.mxu0 0.0
    %163 = vmatpush.msra.mxu0 0.0
    %164 = vmatpush.msra.mxu0 0.0
    %165 = vmatpush.msra.mxu0 0.0
    %166 = vmatpush.msra.mxu0 0.0
    %167 = vmatpush.msra.mxu0 %v114
    %168 = vmatpush.msra.mxu0 %v113
    %169 = vmatpush.msra.mxu0 %v112
    %170 = vmatpush.msra.mxu0 %v111
    %171 = vmatmul.f32.gmra.mxu0 %v150
    %v172 = vpop.f32.mrf.mxu0
    %v173 = vadd.f32 %v147, %v172
    %174 = vmatmul.f32.gmra.mxu0 %v153
    %v175 = vpop.f32.mrf.mxu0
    %v176 = vadd.f32 %v147, %v175
    %177 = vdwg.mxu0
    %180 = vrot.lane.b32.xlu0 %v173, 96
    %v181 = vpop.permute.xlu0 %180
    %182 = vrot.lane.b32.xlu0 %v176, 96
    %v183 = vpop.permute.xlu0 %182
    %vm184 = vcmask 64512
    %v185 = vsel %vm184, %v173, 0
    %v187 = vsel %vm184, %v176, 0
    %v189 = vsel %vm184, %v181, 0
    %v191 = vsel %vm184, %v183, 0
    %193 = vmatpush.xpose.msra.mxu0 0.0
    %194 = vmatpush.xpose.msra.mxu0 0.0
    %195 = vmatpush.xpose.msra.mxu0 0.0
    %196 = vmatpush.xpose.msra.mxu0 0.0
    %197 = vmatpush.xpose.msra.mxu0 0.0
    %198 = vmatpush.xpose.msra.mxu0 0.0
    %199 = vmatpush.xpose.msra.mxu0 0.0
    %200 = vmatpush.xpose.msra.mxu0 0.0
    %201 = vmatpush.xpose.msra.mxu0 0.0
    %202 = vmatpush.xpose.msra.mxu0 0.0
    %203 = vmatpush.xpose.msra.mxu0 0.0
    %204 = vmatpush.xpose.msra.mxu0 0.0
    %205 = vmatpush.xpose.msra.mxu0 0.0
    %206 = vmatpush.xpose.msra.mxu0 0.0
    %207 = vmatpush.xpose.msra.mxu0 %v191
    %208 = vmatpush.xpose.msra.mxu0 %v189
    %209 = vmatmul.f32.gmra.mxu0 %v185
    %v210 = vpop.f32.mrf.mxu0
    %v211 = vadd.f32 0.0, %v210
    %212 = vmatmul.f32.gmra.mxu0 %v187
    %v213 = vpop.f32.mrf.mxu0
    %v214 = vadd.f32 0.0, %v213
    %215 = vdwg.mxu0
    %216 = vrot.lane.b32.xlu0 %v173, 120
    %v217 = vpop.permute.xlu0 %216
    %218 = vrot.lane.b32.xlu0 %v176, 120
    %v219 = vpop.permute.xlu0 %218
    %220 = vrot.lane.b32.xlu0 %v173, 88
    %v221 = vpop.permute.xlu0 %220
    %222 = vrot.lane.b32.xlu0 %v176, 88
    %v223 = vpop.permute.xlu0 %222
    %v224 = vsel %vm184, %v217, 0
    %v226 = vsel %vm184, %v219, 0
    %v228 = vsel %vm184, %v221, 0
    %v230 = vsel %vm184, %v223, 0
    %232 = vmatpush.xpose.msra.mxu0 0.0
    %233 = vmatpush.xpose.msra.mxu0 0.0
    %234 = vmatpush.xpose.msra.mxu0 0.0
    %235 = vmatpush.xpose.msra.mxu0 0.0
    %236 = vmatpush.xpose.msra.mxu0 0.0
    %237 = vmatpush.xpose.msra.mxu0 0.0
    %238 = vmatpush.xpose.msra.mxu0 0.0
    %239 = vmatpush.xpose.msra.mxu0 0.0
    %240 = vmatpush.xpose.msra.mxu0 0.0
    %241 = vmatpush.xpose.msra.mxu0 0.0
    %242 = vmatpush.xpose.msra.mxu0 0.0
    %243 = vmatpush.xpose.msra.mxu0 0.0
    %244 = vmatpush.xpose.msra.mxu0 0.0
    %245 = vmatpush.xpose.msra.mxu0 0.0
    %246 = vmatpush.xpose.msra.mxu0 %v230
    %247 = vmatpush.xpose.msra.mxu0 %v228
    %248 = vmatmul.f32.gmra.mxu0 %v224
    %v249 = vpop.f32.mrf.mxu0
    %v250 = vadd.f32 0.0, %v249
    %251 = vmatmul.f32.gmra.mxu0 %v226
    %v252 = vpop.f32.mrf.mxu0
    %v253 = vadd.f32 0.0, %v252
    %254 = vdwg.mxu0
    %255 = vrot.lane.b32.xlu0 %v173, 112
    %v256 = vpop.permute.xlu0 %255
    %257 = vrot.lane.b32.xlu0 %v176, 112
    %v258 = vpop.permute.xlu0 %257
    %259 = vrot.lane.b32.xlu0 %v173, 80
    %v260 = vpop.permute.xlu0 %259
    %261 = vrot.lane.b32.xlu0 %v176, 80
    %v262 = vpop.permute.xlu0 %261
    %v263 = vsel %vm184, %v256, 0
    %v265 = vsel %vm184, %v258, 0
    %v267 = vsel %vm184, %v260, 0
    %v269 = vsel %vm184, %v262, 0
    %271 = vmatpush.xpose.msra.mxu0 0.0
    %272 = vmatpush.xpose.msra.mxu0 0.0
    %273 = vmatpush.xpose.msra.mxu0 0.0
    %274 = vmatpush.xpose.msra.mxu0 0.0
    %275 = vmatpush.xpose.msra.mxu0 0.0
    %276 = vmatpush.xpose.msra.mxu0 0.0
    %277 = vmatpush.xpose.msra.mxu0 0.0
    %278 = vmatpush.xpose.msra.mxu0 0.0
    %279 = vmatpush.xpose.msra.mxu0 0.0
    %280 = vmatpush.xpose.msra.mxu0 0.0
    %281 = vmatpush.xpose.msra.mxu0 0.0
    %282 = vmatpush.xpose.msra.mxu0 0.0
    %283 = vmatpush.xpose.msra.mxu0 0.0
    %284 = vmatpush.xpose.msra.mxu0 0.0
    %285 = vmatpush.xpose.msra.mxu0 %v269
    %286 = vmatpush.xpose.msra.mxu0 %v267
    %287 = vmatmul.f32.gmra.mxu0 %v263
    %v288 = vpop.f32.mrf.mxu0
    %v289 = vadd.f32 0.0, %v288
    %290 = vmatmul.f32.gmra.mxu0 %v265
    %v291 = vpop.f32.mrf.mxu0
    %v292 = vadd.f32 0.0, %v291
    %293 = vdwg.mxu0
    %294 = vrot.lane.b32.xlu0 %v173, 104
    %v295 = vpop.permute.xlu0 %294
    %296 = vrot.lane.b32.xlu0 %v176, 104
    %v297 = vpop.permute.xlu0 %296
    %298 = vrot.lane.b32.xlu0 %v173, 72
    %v299 = vpop.permute.xlu0 %298
    %300 = vrot.lane.b32.xlu0 %v176, 72
    %v301 = vpop.permute.xlu0 %300
    %v302 = vsel %vm184, %v295, 0
    %v304 = vsel %vm184, %v297, 0
    %v306 = vsel %vm184, %v299, 0
    %v308 = vsel %vm184, %v301, 0
    %310 = vmatpush.xpose.msra.mxu0 0.0
    %311 = vmatpush.xpose.msra.mxu0 0.0
    %312 = vmatpush.xpose.msra.mxu0 0.0
    %313 = vmatpush.xpose.msra.mxu0 0.0
    %314 = vmatpush.xpose.msra.mxu0 0.0
    %315 = vmatpush.xpose.msra.mxu0 0.0
    %316 = vmatpush.xpose.msra.mxu0 0.0
    %317 = vmatpush.xpose.msra.mxu0 0.0
    %318 = vmatpush.xpose.msra.mxu0 0.0
    %319 = vmatpush.xpose.msra.mxu0 0.0
    %320 = vmatpush.xpose.msra.mxu0 0.0
    %321 = vmatpush.xpose.msra.mxu0 0.0
    %322 = vmatpush.xpose.msra.mxu0 0.0
    %323 = vmatpush.xpose.msra.mxu0 0.0
    %324 = vmatpush.xpose.msra.mxu0 %v308
    %325 = vmatpush.xpose.msra.mxu0 %v306
    %326 = vmatmul.f32.gmra.mxu0 %v302
    %v327 = vpop.f32.mrf.mxu0
    %v328 = vadd.f32 0.0, %v327
    %329 = vmatmul.f32.gmra.mxu0 %v304
    %v330 = vpop.f32.mrf.mxu0
    %v331 = vadd.f32 0.0, %v330
    %332 = vdwg.mxu0
    %v333 = vmul.f32 %v211, 0.35355338
    %v334 = vmul.f32 %v214, 0.35355338
    %v335 = vmul.f32 %v250, 0.35355338
    %v336 = vmul.f32 %v253, 0.35355338
    %v337 = vmul.f32 %v289, 0.35355338
    %v338 = vmul.f32 %v292, 0.35355338
    %v339 = vmul.f32 %v328, 0.35355338
    %v340 = vmul.f32 %v331, 0.35355338
    %v341 = vadd.f32 %v333, %v29
    %v342 = vadd.f32 %v334, %v30
    %v343 = vadd.f32 %v335, %v31
    %v344 = vadd.f32 %v336, %v32
    %v345 = vadd.f32 %v337, %v33
    %v346 = vadd.f32 %v338, %v34
    %v347 = vadd.f32 %v339, %v35
    %v348 = vadd.f32 %v340, %v36
    %vm349 = vcmask 130048
    %v350 = vsel %vm349, %v341, -inf
    %351 = vmax.xlane.f32.xlu0 %v350
    %v352 = vpop.xlane.xlu0 %351
    %v353 = vsel %vm349, %v342, -inf
    %354 = vmax.xlane.f32.xlu0 %v353
    %v355 = vpop.xlane.xlu0 %354
    %v356 = vsel %vm349, %v343, -inf
    %357 = vmax.xlane.f32.xlu0 %v356
    %v358 = vpop.xlane.xlu0 %357
    %v359 = vsel %vm349, %v344, -inf
    %360 = vmax.xlane.f32.xlu0 %v359
    %v361 = vpop.xlane.xlu0 %360
    %v362 = vsel %vm349, %v345, -inf
    %363 = vmax.xlane.f32.xlu0 %v362
    %v364 = vpop.xlane.xlu0 %363
    %v365 = vsel %vm349, %v346, -inf
    %366 = vmax.xlane.f32.xlu0 %v365
    %v367 = vpop.xlane.xlu0 %366
    %v368 = vsel %vm349, %v347, -inf
    %369 = vmax.xlane.f32.xlu0 %v368
    %v370 = vpop.xlane.xlu0 %369
    %v371 = vsel %vm349, %v348, -inf
    %372 = vmax.xlane.f32.xlu0 %v371
    %v373 = vpop.xlane.xlu0 %372
    %v374 = vsub.f32 %v341, %v352
    %v375 = vsub.f32 %v342, %v355
    %v376 = vsub.f32 %v343, %v358
    %v377 = vsub.f32 %v344, %v361
    %v378 = vsub.f32 %v345, %v364
    %v379 = vsub.f32 %v346, %v367
    %v380 = vsub.f32 %v347, %v370
    %v381 = vsub.f32 %v348, %v373
    %v382 = vmul.f32 %v374, 1.442695
    %v383 = vpow.pop %v382
    %v384 = vmul.f32 %v375, 1.442695
    %v385 = vpow.pop %v384
    %v386 = vmul.f32 %v376, 1.442695
    %v387 = vpow.pop %v386
    %v388 = vmul.f32 %v377, 1.442695
    %v389 = vpow.pop %v388
    %v390 = vmul.f32 %v378, 1.442695
    %v391 = vpow.pop %v390
    %v392 = vmul.f32 %v379, 1.442695
    %v393 = vpow.pop %v392
    %v394 = vmul.f32 %v380, 1.442695
    %v395 = vpow.pop %v394
    %v396 = vmul.f32 %v381, 1.442695
    %v397 = vpow.pop %v396
    %v398 = vsel %vm349, %v383, 0.0
    %399 = vadd.xlane.f32.xlu0 %v398
    %v400 = vpop.xlane.xlu0 %399
    %v401 = vsel %vm349, %v385, 0.0
    %402 = vadd.xlane.f32.xlu0 %v401
    %v403 = vpop.xlane.xlu0 %402
    %v404 = vsel %vm349, %v387, 0.0
    %405 = vadd.xlane.f32.xlu0 %v404
    %v406 = vpop.xlane.xlu0 %405
    %v407 = vsel %vm349, %v389, 0.0
    %408 = vadd.xlane.f32.xlu0 %v407
    %v409 = vpop.xlane.xlu0 %408
    %v410 = vsel %vm349, %v391, 0.0
    %411 = vadd.xlane.f32.xlu0 %v410
    %v412 = vpop.xlane.xlu0 %411
    %v413 = vsel %vm349, %v393, 0.0
    %414 = vadd.xlane.f32.xlu0 %v413
    %v415 = vpop.xlane.xlu0 %414
    %v416 = vsel %vm349, %v395, 0.0
    %417 = vadd.xlane.f32.xlu0 %v416
    %v418 = vpop.xlane.xlu0 %417
    %v419 = vsel %vm349, %v397, 0.0
    %420 = vadd.xlane.f32.xlu0 %v419
    %v421 = vpop.xlane.xlu0 %420
    %v422 = vrcp.pop %v400
    %v423 = vmul.f32 %v400, %v422
    %v424 = vsub.f32 1.0, %v423
    %v425 = vmul.f32 %v422, %v424
    %v426 = vadd.f32 %v422, %v425
    %vm427 = vweird.f32 %v400
    %vm428 = vweird.f32 %v422
    %vm429 = vmor %vm427, %vm428
    %v430 = vsel %vm429, %v422, %v426
    %v431 = vand.u32 2147483647, %v400
    %vm432 = vcmp.eq.f32.partialorder %v431, 8.507059e+37
    %v433 = vand.u32 %v400, 2147483648
    %v434 = vor.u32 1.1754944e-38, %v433
    %v435 = vsel %vm432, %v434, %v430
    %v436 = vmul.f32 %v383, %v435
    %v437 = vrcp.pop %v403
    %v438 = vmul.f32 %v403, %v437
    %v439 = vsub.f32 1.0, %v438
    %v440 = vmul.f32 %v437, %v439
    %v441 = vadd.f32 %v437, %v440
    %vm442 = vweird.f32 %v403
    %vm443 = vweird.f32 %v437
    %vm444 = vmor %vm442, %vm443
    %v445 = vsel %vm444, %v437, %v441
    %v446 = vand.u32 2147483647, %v403
    %vm447 = vcmp.eq.f32.partialorder %v446, 8.507059e+37
    %v448 = vand.u32 %v403, 2147483648
    %v449 = vor.u32 1.1754944e-38, %v448
    %v450 = vsel %vm447, %v449, %v445
    %v451 = vmul.f32 %v385, %v450
    %v452 = vrcp.pop %v406
    %v453 = vmul.f32 %v406, %v452
    %v454 = vsub.f32 1.0, %v453
    %v455 = vmul.f32 %v452, %v454
    %v456 = vadd.f32 %v452, %v455
    %vm457 = vweird.f32 %v406
    %vm458 = vweird.f32 %v452
    %vm459 = vmor %vm457, %vm458
    %v460 = vsel %vm459, %v452, %v456
    %v461 = vand.u32 2147483647, %v406
    %vm462 = vcmp.eq.f32.partialorder %v461, 8.507059e+37
    %v463 = vand.u32 %v406, 2147483648
    %v464 = vor.u32 1.1754944e-38, %v463
    %v465 = vsel %vm462, %v464, %v460
    %v466 = vmul.f32 %v387, %v465
    %v467 = vrcp.pop %v409
    %v468 = vmul.f32 %v409, %v467
    %v469 = vsub.f32 1.0, %v468
    %v470 = vmul.f32 %v467, %v469
    %v471 = vadd.f32 %v467, %v470
    %vm472 = vweird.f32 %v409
    %vm473 = vweird.f32 %v467
    %vm474 = vmor %vm472, %vm473
    %v475 = vsel %vm474, %v467, %v471
    %v476 = vand.u32 2147483647, %v409
    %vm477 = vcmp.eq.f32.partialorder %v476, 8.507059e+37
    %v478 = vand.u32 %v409, 2147483648
    %v479 = vor.u32 1.1754944e-38, %v478
    %v480 = vsel %vm477, %v479, %v475
    %v481 = vmul.f32 %v389, %v480
    %v482 = vrcp.pop %v412
    %v483 = vmul.f32 %v412, %v482
    %v484 = vsub.f32 1.0, %v483
    %v485 = vmul.f32 %v482, %v484
    %v486 = vadd.f32 %v482, %v485
    %vm487 = vweird.f32 %v412
    %vm488 = vweird.f32 %v482
    %vm489 = vmor %vm487, %vm488
    %v490 = vsel %vm489, %v482, %v486
    %v491 = vand.u32 2147483647, %v412
    %vm492 = vcmp.eq.f32.partialorder %v491, 8.507059e+37
    %v493 = vand.u32 %v412, 2147483648
    %v494 = vor.u32 1.1754944e-38, %v493
    %v495 = vsel %vm492, %v494, %v490
    %v496 = vmul.f32 %v391, %v495
    %v497 = vrcp.pop %v415
    %v498 = vmul.f32 %v415, %v497
    %v499 = vsub.f32 1.0, %v498
    %v500 = vmul.f32 %v497, %v499
    %v501 = vadd.f32 %v497, %v500
    %vm502 = vweird.f32 %v415
    %vm503 = vweird.f32 %v497
    %vm504 = vmor %vm502, %vm503
    %v505 = vsel %vm504, %v497, %v501
    %v506 = vand.u32 2147483647, %v415
    %vm507 = vcmp.eq.f32.partialorder %v506, 8.507059e+37
    %v508 = vand.u32 %v415, 2147483648
    %v509 = vor.u32 1.1754944e-38, %v508
    %v510 = vsel %vm507, %v509, %v505
    %v511 = vmul.f32 %v393, %v510
    %v512 = vrcp.pop %v418
    %v513 = vmul.f32 %v418, %v512
    %v514 = vsub.f32 1.0, %v513
    %v515 = vmul.f32 %v512, %v514
    %v516 = vadd.f32 %v512, %v515
    %vm517 = vweird.f32 %v418
    %vm518 = vweird.f32 %v512
    %vm519 = vmor %vm517, %vm518
    %v520 = vsel %vm519, %v512, %v516
    %v521 = vand.u32 2147483647, %v418
    %vm522 = vcmp.eq.f32.partialorder %v521, 8.507059e+37
    %v523 = vand.u32 %v418, 2147483648
    %v524 = vor.u32 1.1754944e-38, %v523
    %v525 = vsel %vm522, %v524, %v520
    %v526 = vmul.f32 %v395, %v525
    %v527 = vrcp.pop %v421
    %v528 = vmul.f32 %v421, %v527
    %v529 = vsub.f32 1.0, %v528
    %v530 = vmul.f32 %v527, %v529
    %v531 = vadd.f32 %v527, %v530
    %vm532 = vweird.f32 %v421
    %vm533 = vweird.f32 %v527
    %vm534 = vmor %vm532, %vm533
    %v535 = vsel %vm534, %v527, %v531
    %v536 = vand.u32 2147483647, %v421
    %vm537 = vcmp.eq.f32.partialorder %v536, 8.507059e+37
    %v538 = vand.u32 %v421, 2147483648
    %v539 = vor.u32 1.1754944e-38, %v538
    %v540 = vsel %vm537, %v539, %v535
    %v541 = vmul.f32 %v397, %v540
    %542 = vrot.lane.b32.xlu0 %v173, 64
    %v543 = vpop.permute.xlu0 %542
    %544 = vrot.lane.b32.xlu0 %v176, 64
    %v545 = vpop.permute.xlu0 %544
    %v549 = vsel %vm349, %v436, 0
    %v552 = vsel %vm349, %v451, 0
    %554 = vmatpush.msra.mxu0 0.0
    %555 = vmatpush.msra.mxu0 0.0
    %556 = vmatpush.msra.mxu0 0.0
    %557 = vmatpush.msra.mxu0 0.0
    %558 = vmatpush.msra.mxu0 0.0
    %559 = vmatpush.msra.mxu0 0.0
    %560 = vmatpush.msra.mxu0 0.0
    %561 = vmatpush.msra.mxu0 0.0
    %562 = vmatpush.msra.mxu0 0.0
    %563 = vmatpush.msra.mxu0 0.0
    %564 = vmatpush.msra.mxu0 0.0
    %565 = vmatpush.msra.mxu0 0.0
    %566 = vmatpush.msra.mxu0 0.0
    %567 = vmatpush.msra.mxu0 0.0
    %568 = vmatpush.msra.mxu0 %v545
    %569 = vmatpush.msra.mxu0 %v543
    %570 = vmatmul.f32.gmra.mxu0 %v549
    %v571 = vpop.f32.mrf.mxu0
    %v572 = vadd.f32 0.0, %v571
    %573 = vmatmul.f32.gmra.mxu0 %v552
    %v574 = vpop.f32.mrf.mxu0
    %v575 = vadd.f32 0.0, %v574
    %576 = vdwg.mxu0
    %577 = vrot.lane.b32.xlu0 %v173, 56
    %v578 = vpop.permute.xlu0 %577
    %579 = vrot.lane.b32.xlu0 %v176, 56
    %v580 = vpop.permute.xlu0 %579
    %v584 = vsel %vm349, %v466, 0
    %v587 = vsel %vm349, %v481, 0
    %589 = vmatpush.msra.mxu0 0.0
    %590 = vmatpush.msra.mxu0 0.0
    %591 = vmatpush.msra.mxu0 0.0
    %592 = vmatpush.msra.mxu0 0.0
    %593 = vmatpush.msra.mxu0 0.0
    %594 = vmatpush.msra.mxu0 0.0
    %595 = vmatpush.msra.mxu0 0.0
    %596 = vmatpush.msra.mxu0 0.0
    %597 = vmatpush.msra.mxu0 0.0
    %598 = vmatpush.msra.mxu0 0.0
    %599 = vmatpush.msra.mxu0 0.0
    %600 = vmatpush.msra.mxu0 0.0
    %601 = vmatpush.msra.mxu0 0.0
    %602 = vmatpush.msra.mxu0 0.0
    %603 = vmatpush.msra.mxu0 %v580
    %604 = vmatpush.msra.mxu0 %v578
    %605 = vmatmul.f32.gmra.mxu0 %v584
    %v606 = vpop.f32.mrf.mxu0
    %v607 = vadd.f32 0.0, %v606
    %608 = vmatmul.f32.gmra.mxu0 %v587
    %v609 = vpop.f32.mrf.mxu0
    %v610 = vadd.f32 0.0, %v609
    %611 = vdwg.mxu0
    %v613 = vsel %vm184, %v607, 0
    %v616 = vsel %vm184, %v610, 0
    %618 = vmatpush.msra.mxu0 0.0
    %619 = vmatpush.msra.mxu0 0.0
    %620 = vmatpush.msra.mxu0 0.0
    %621 = vmatpush.msra.mxu0 0.0
    %622 = vmatpush.msra.mxu0 0.0
    %623 = vmatpush.msra.mxu0 0.0
    %624 = vmatpush.msra.mxu0 0.0
    %625 = vmatpush.msra.mxu0 0.0
    %626 = vmatpush.msra.mxu0 0.0
    %627 = vmatpush.msra.mxu0 0.0
    %628 = vmatpush.msra.mxu0 0.0
    %629 = vmatpush.msra.mxu0 0.0
    %630 = vmatpush.msra.mxu0 0.0
    %631 = vmatpush.msra.mxu0 0.0
    %632 = vmatpush.msra.mxu0 0.0
    %633 = vmatpush.msra.mxu0 %v117
    %634 = vmatmul.f32.gmra.mxu0 %v613
    %v635 = vpop.f32.mrf.mxu0
    %v636 = vadd.f32 0.0, %v635
    %637 = vmatmul.f32.gmra.mxu0 %v616
    %v638 = vpop.f32.mrf.mxu0
    %v639 = vadd.f32 0.0, %v638
    %640 = vdwg.mxu0
    %v642 = vsel %vm184, %v572, 0
    %v645 = vsel %vm184, %v575, 0
    %647 = vmatpush.msra.mxu0 0.0
    %648 = vmatpush.msra.mxu0 0.0
    %649 = vmatpush.msra.mxu0 0.0
    %650 = vmatpush.msra.mxu0 0.0
    %651 = vmatpush.msra.mxu0 0.0
    %652 = vmatpush.msra.mxu0 0.0
    %653 = vmatpush.msra.mxu0 0.0
    %654 = vmatpush.msra.mxu0 0.0
    %655 = vmatpush.msra.mxu0 0.0
    %656 = vmatpush.msra.mxu0 0.0
    %657 = vmatpush.msra.mxu0 0.0
    %658 = vmatpush.msra.mxu0 0.0
    %659 = vmatpush.msra.mxu0 0.0
    %660 = vmatpush.msra.mxu0 0.0
    %661 = vmatpush.msra.mxu0 0.0
    %662 = vmatpush.msra.mxu0 %v116
    %663 = vmatmul.f32.gmra.mxu0 %v642
    %v664 = vpop.f32.mrf.mxu0
    %v665 = vadd.f32 %v636, %v664
    %666 = vmatmul.f32.gmra.mxu0 %v645
    %v667 = vpop.f32.mrf.mxu0
    %v668 = vadd.f32 %v639, %v667
    %669 = vdwg.mxu0
    %670 = vrot.lane.b32.xlu0 %v173, 48
    %v671 = vpop.permute.xlu0 %670
    %672 = vrot.lane.b32.xlu0 %v176, 48
    %v673 = vpop.permute.xlu0 %672
    %v677 = vsel %vm349, %v496, 0
    %v680 = vsel %vm349, %v511, 0
    %682 = vmatpush.msra.mxu0 0.0
    %683 = vmatpush.msra.mxu0 0.0
    %684 = vmatpush.msra.mxu0 0.0
    %685 = vmatpush.msra.mxu0 0.0
    %686 = vmatpush.msra.mxu0 0.0
    %687 = vmatpush.msra.mxu0 0.0
    %688 = vmatpush.msra.mxu0 0.0
    %689 = vmatpush.msra.mxu0 0.0
    %690 = vmatpush.msra.mxu0 0.0
    %691 = vmatpush.msra.mxu0 0.0
    %692 = vmatpush.msra.mxu0 0.0
    %693 = vmatpush.msra.mxu0 0.0
    %694 = vmatpush.msra.mxu0 0.0
    %695 = vmatpush.msra.mxu0 0.0
    %696 = vmatpush.msra.mxu0 %v673
    %697 = vmatpush.msra.mxu0 %v671
    %698 = vmatmul.f32.gmra.mxu0 %v677
    %v699 = vpop.f32.mrf.mxu0
    %v700 = vadd.f32 0.0, %v699
    %701 = vmatmul.f32.gmra.mxu0 %v680
    %v702 = vpop.f32.mrf.mxu0
    %v703 = vadd.f32 0.0, %v702
    %704 = vdwg.mxu0
    %v706 = vsel %vm184, %v700, 0
    %v709 = vsel %vm184, %v703, 0
    %711 = vmatpush.msra.mxu0 0.0
    %712 = vmatpush.msra.mxu0 0.0
    %713 = vmatpush.msra.mxu0 0.0
    %714 = vmatpush.msra.mxu0 0.0
    %715 = vmatpush.msra.mxu0 0.0
    %716 = vmatpush.msra.mxu0 0.0
    %717 = vmatpush.msra.mxu0 0.0
    %718 = vmatpush.msra.mxu0 0.0
    %719 = vmatpush.msra.mxu0 0.0
    %720 = vmatpush.msra.mxu0 0.0
    %721 = vmatpush.msra.mxu0 0.0
    %722 = vmatpush.msra.mxu0 0.0
    %723 = vmatpush.msra.mxu0 0.0
    %724 = vmatpush.msra.mxu0 0.0
    %725 = vmatpush.msra.mxu0 0.0
    %726 = vmatpush.msra.mxu0 %v118
    %727 = vmatmul.f32.gmra.mxu0 %v706
    %v728 = vpop.f32.mrf.mxu0
    %v729 = vadd.f32 0.0, %v728
    %730 = vmatmul.f32.gmra.mxu0 %v709
    %v731 = vpop.f32.mrf.mxu0
    %v732 = vadd.f32 0.0, %v731
    %733 = vdwg.mxu0
    %v734 = vadd.f32 %v665, %v729
    %v735 = vadd.f32 %v668, %v732
    %736 = vrot.lane.b32.xlu0 %v173, 40
    %v737 = vpop.permute.xlu0 %736
    %738 = vrot.lane.b32.xlu0 %v176, 40
    %v739 = vpop.permute.xlu0 %738
    %v743 = vsel %vm349, %v526, 0
    %v746 = vsel %vm349, %v541, 0
    %748 = vmatpush.msra.mxu0 0.0
    %749 = vmatpush.msra.mxu0 0.0
    %750 = vmatpush.msra.mxu0 0.0
    %751 = vmatpush.msra.mxu0 0.0
    %752 = vmatpush.msra.mxu0 0.0
    %753 = vmatpush.msra.mxu0 0.0
    %754 = vmatpush.msra.mxu0 0.0
    %755 = vmatpush.msra.mxu0 0.0
    %756 = vmatpush.msra.mxu0 0.0
    %757 = vmatpush.msra.mxu0 0.0
    %758 = vmatpush.msra.mxu0 0.0
    %759 = vmatpush.msra.mxu0 0.0
    %760 = vmatpush.msra.mxu0 0.0
    %761 = vmatpush.msra.mxu0 0.0
    %762 = vmatpush.msra.mxu0 %v739
    %763 = vmatpush.msra.mxu0 %v737
    %764 = vmatmul.f32.gmra.mxu0 %v743
    %v765 = vpop.f32.mrf.mxu0
    %v766 = vadd.f32 0.0, %v765
    %767 = vmatmul.f32.gmra.mxu0 %v746
    %v768 = vpop.f32.mrf.mxu0
    %v769 = vadd.f32 0.0, %v768
    %770 = vdwg.mxu0
    %v772 = vsel %vm184, %v766, 0
    %v775 = vsel %vm184, %v769, 0
    %777 = vmatpush.msra.mxu0 0.0
    %778 = vmatpush.msra.mxu0 0.0
    %779 = vmatpush.msra.mxu0 0.0
    %780 = vmatpush.msra.mxu0 0.0
    %781 = vmatpush.msra.mxu0 0.0
    %782 = vmatpush.msra.mxu0 0.0
    %783 = vmatpush.msra.mxu0 0.0
    %784 = vmatpush.msra.mxu0 0.0
    %785 = vmatpush.msra.mxu0 0.0
    %786 = vmatpush.msra.mxu0 0.0
    %787 = vmatpush.msra.mxu0 0.0
    %788 = vmatpush.msra.mxu0 0.0
    %789 = vmatpush.msra.mxu0 0.0
    %790 = vmatpush.msra.mxu0 0.0
    %791 = vmatpush.msra.mxu0 0.0
    %792 = vmatpush.msra.mxu0 %v119
    %793 = vmatmul.f32.gmra.mxu0 %v772
    %v794 = vpop.f32.mrf.mxu0
    %v795 = vadd.f32 0.0, %v794
    %796 = vmatmul.f32.gmra.mxu0 %v775
    %v797 = vpop.f32.mrf.mxu0
    %v798 = vadd.f32 0.0, %v797
    %799 = vdwg.mxu0
    %v800 = vadd.f32 %v734, %v795
    %v801 = vadd.f32 %v735, %v798
    %v802 = vperm.slane %v120, 0
    %v803 = vadd.f32 %v800, %v802
    %v804 = vadd.f32 %v801, %v802
    %v805 = vadd.f32 %v109, %v803
    %v806 = vadd.f32 %v110, %v804
    %v807 = vsel %vm148, %v805, 0.0
    %808 = vadd.xlane.f32.xlu0 %v807
    %v809 = vpop.xlane.xlu0 %808
    %v810 = vsel %vm148, %v806, 0.0
    %811 = vadd.xlane.f32.xlu0 %v810
    %v812 = vpop.xlane.xlu0 %811
    %v813 = vrcp.pop 32.0
    %v814 = vmul.f32 32.0, %v813
    %v815 = vsub.f32 1.0, %v814
    %v816 = vmul.f32 %v813, %v815
    %v817 = vadd.f32 %v813, %v816
    %vm818 = vweird.f32 %v813
    %v819 = vsel %vm818, %v813, %v817
    %v820 = vmul.f32 %v809, %v819
    %v821 = vmul.f32 %v812, %v819
    %v822 = vsub.f32 %v805, %v820
    %v823 = vsub.f32 %v806, %v821
    %v824 = vmul.f32 %v822, %v822
    %v825 = vmul.f32 %v823, %v823
    %v826 = vsel %vm148, %v824, 0.0
    %827 = vadd.xlane.f32.xlu0 %v826
    %v828 = vpop.xlane.xlu0 %827
    %v829 = vsel %vm148, %v825, 0.0
    %830 = vadd.xlane.f32.xlu0 %v829
    %v831 = vpop.xlane.xlu0 %830
    %v832 = vmul.f32 %v828, %v819
    %v833 = vmul.f32 %v831, %v819
    %v834 = vadd.f32 %v832, 1e-05
    %v835 = vadd.f32 %v833, 1e-05
    %v836 = vrsqrt.pop %v834
    %v837 = vmul.f32 %v836, %v834
    %v838 = vmul.f32 %v837, %v836
    %v839 = vmul.f32 0.5, %v838
    %v840 = vsub.f32 1.5, %v839
    %v841 = vmul.f32 %v836, %v840
    %vm842 = vweird.f32 %v834
    %vm843 = vweird.f32 %v836
    %vm844 = vmor %vm842, %vm843
    %v845 = vsel %vm844, %v836, %v841
    %v846 = vrsqrt.pop %v835
    %v847 = vmul.f32 %v846, %v835
    %v848 = vmul.f32 %v847, %v846
    %v849 = vmul.f32 0.5, %v848
    %v850 = vsub.f32 1.5, %v849
    %v851 = vmul.f32 %v846, %v850
    %vm852 = vweird.f32 %v835
    %vm853 = vweird.f32 %v846
    %vm854 = vmor %vm852, %vm853
    %v855 = vsel %vm854, %v846, %v851
    %v856 = vmul.f32 %v822, %v845
    %v857 = vmul.f32 %v823, %v855
    %v858 = vperm.slane %v121, 0
    %v859 = vmul.f32 %v856, %v858
    %v860 = vmul.f32 %v857, %v858
    %v861 = vperm.slane %v122, 0
    %v862 = vadd.f32 %v859, %v861
    %v863 = vadd.f32 %v860, %v861
    %v864 = vperm.slane %v127, 0
    %v866 = vsel %vm148, %v862, 0
    %v869 = vsel %vm148, %v863, 0
    %871 = vmatpush.msra.mxu0 0.0
    %872 = vmatpush.msra.mxu0 0.0
    %873 = vmatpush.msra.mxu0 0.0
    %874 = vmatpush.msra.mxu0 0.0
    %875 = vmatpush.msra.mxu0 0.0
    %876 = vmatpush.msra.mxu0 0.0
    %877 = vmatpush.msra.mxu0 0.0
    %878 = vmatpush.msra.mxu0 0.0
    %879 = vmatpush.msra.mxu0 0.0
    %880 = vmatpush.msra.mxu0 0.0
    %881 = vmatpush.msra.mxu0 0.0
    %882 = vmatpush.msra.mxu0 0.0
    %883 = vmatpush.msra.mxu0 %v126
    %884 = vmatpush.msra.mxu0 %v125
    %885 = vmatpush.msra.mxu0 %v124
    %886 = vmatpush.msra.mxu0 %v123
    %887 = vmatmul.f32.gmra.mxu0 %v866
    %v888 = vpop.f32.mrf.mxu0
    %v889 = vadd.f32 %v864, %v888
    %890 = vmatmul.f32.gmra.mxu0 %v869
    %v891 = vpop.f32.mrf.mxu0
    %v892 = vadd.f32 %v864, %v891
    %893 = vdwg.mxu0
    %v894 = vmax.f32 %v889, 0.0
    %v895 = vmax.f32 %v892, 0.0
    %v896 = vperm.slane %v144, 0
    %897 = vmatpush.msra.mxu0 %v143
    %898 = vmatpush.msra.mxu0 %v142
    %899 = vmatpush.msra.mxu0 %v141
    %900 = vmatpush.msra.mxu0 %v140
    %901 = vmatpush.msra.mxu0 %v139
    %902 = vmatpush.msra.mxu0 %v138
    %903 = vmatpush.msra.mxu0 %v137
    %904 = vmatpush.msra.mxu0 %v136
    %905 = vmatpush.msra.mxu0 %v135
    %906 = vmatpush.msra.mxu0 %v134
    %907 = vmatpush.msra.mxu0 %v133
    %908 = vmatpush.msra.mxu0 %v132
    %909 = vmatpush.msra.mxu0 %v131
    %910 = vmatpush.msra.mxu0 %v130
    %911 = vmatpush.msra.mxu0 %v129
    %912 = vmatpush.msra.mxu0 %v128
    %913 = vmatmul.f32.gmra.mxu0 %v894
    %v914 = vpop.f32.mrf.mxu0
    %v915 = vadd.f32 %v896, %v914
    %916 = vmatmul.f32.gmra.mxu0 %v895
    %v917 = vpop.f32.mrf.mxu0
    %v918 = vadd.f32 %v896, %v917
    %919 = vdwg.mxu0
    %v920 = vadd.f32 %v862, %v915
    %v921 = vadd.f32 %v863, %v918
    %v922 = vsel %vm148, %v920, 0.0
    %923 = vadd.xlane.f32.xlu0 %v922
    %v924 = vpop.xlane.xlu0 %923
    %v925 = vsel %vm148, %v921, 0.0
    %926 = vadd.xlane.f32.xlu0 %v925
    %v927 = vpop.xlane.xlu0 %926
    %v928 = vmul.f32 %v924, %v819
    %v929 = vmul.f32 %v927, %v819
    %v930 = vsub.f32 %v920, %v928
    %v931 = vsub.f32 %v921, %v929
    %v932 = vmul.f32 %v930, %v930
    %v933 = vmul.f32 %v931, %v931
    %v934 = vsel %vm148, %v932, 0.0
    %935 = vadd.xlane.f32.xlu0 %v934
    %v936 = vpop.xlane.xlu0 %935
    %v937 = vsel %vm148, %v933, 0.0
    %938 = vadd.xlane.f32.xlu0 %v937
    %v939 = vpop.xlane.xlu0 %938
    %v940 = vmul.f32 %v936, %v819
    %v941 = vmul.f32 %v939, %v819
    %v942 = vadd.f32 %v940, 1e-05
    %v943 = vadd.f32 %v941, 1e-05
    %v944 = vrsqrt.pop %v942
    %v945 = vmul.f32 %v944, %v942
    %v946 = vmul.f32 %v945, %v944
    %v947 = vmul.f32 0.5, %v946
    %v948 = vsub.f32 1.5, %v947
    %v949 = vmul.f32 %v944, %v948
    %vm950 = vweird.f32 %v942
    %vm951 = vweird.f32 %v944
    %vm952 = vmor %vm950, %vm951
    %v953 = vsel %vm952, %v944, %v949
    %v954 = vrsqrt.pop %v943
    %v955 = vmul.f32 %v954, %v943
    %v956 = vmul.f32 %v955, %v954
    %v957 = vmul.f32 0.5, %v956
    %v958 = vsub.f32 1.5, %v957
    %v959 = vmul.f32 %v954, %v958
    %vm960 = vweird.f32 %v943
    %vm961 = vweird.f32 %v954
    %vm962 = vmor %vm960, %vm961
    %v963 = vsel %vm962, %v954, %v959
    %v964 = vmul.f32 %v930, %v953
    %v965 = vmul.f32 %v931, %v963
    %v966 = vperm.slane %v145, 0
    %v967 = vmul.f32 %v964, %v966
    %v968 = vmul.f32 %v965, %v966
    %v969 = vperm.slane %v146, 0
    %v970 = vadd.f32 %v967, %v969
    %v971 = vadd.f32 %v968, %v969
    %v972 = vld [vmem:[#allocation2 + $0x170] sm:$0xff]
    %v973 = vld [vmem:[#allocation2 + $0x178] sm:$0xff]
    %v974 = vld [vmem:[#allocation2 + $0x180] sm:$0xff]
    %v975 = vld [vmem:[#allocation2 + $0x188] sm:$0xff]
    %v976 = vld [vmem:[#allocation2 + $0x190] sm:$0x1]
    %v977 = vld [vmem:[#allocation2 + $0x198] sm:$0xff]
    %v978 = vld [vmem:[#allocation2 + $0x1a0] sm:$0xff]
    %v979 = vld [vmem:[#allocation2 + $0x1a8] sm:$0xff]
    %v980 = vld [vmem:[#allocation2 + $0x1b0] sm:$0xff]
    %v981 = vld [vmem:[#allocation2 + $0x1b8] sm:$0x1]
    %v982 = vld [vmem:[#allocation2 + $0x1c0] sm:$0x1]
    %v983 = vld [vmem:[#allocation2 + $0x1c8] sm:$0x1]
    %v984 = vld [vmem:[#allocation2 + $0x1d0] sm:$0xff]
    %v985 = vld [vmem:[#allocation2 + $0x1d8] sm:$0xff]
    %v986 = vld [vmem:[#allocation2 + $0x1e0] sm:$0xff]
    %v987 = vld [vmem:[#allocation2 + $0x1e8] sm:$0xff]
    %v988 = vld [vmem:[#allocation2 + $0x1f0] sm:$0x1]
    %v989 = vld [vmem:[#allocation2 + $0x1f8] sm:$0xff]
    %v990 = vld [vmem:[#allocation2 + $0x200] sm:$0xff]
    %v991 = vld [vmem:[#allocation2 + $0x208] sm:$0xff]
    %v992 = vld [vmem:[#allocation2 + $0x210] sm:$0xff]
    %v993 = vld [vmem:[#allocation2 + $0x218] sm:$0xff]
    %v994 = vld [vmem:[#allocation2 + $0x220] sm:$0xff]
    %v995 = vld [vmem:[#allocation2 + $0x228] sm:$0xff]
    %v996 = vld [vmem:[#allocation2 + $0x230] sm:$0xff]
    %v997 = vld [vmem:[#allocation2 + $0x238] sm:$0xff]
    %v998 = vld [vmem:[#allocation2 + $0x240] sm:$0xff]
    %v999 = vld [vmem:[#allocation2 + $0x248] sm:$0xff]
    %v1000 = vld [vmem:[#allocation2 + $0x250] sm:$0xff]
    %v1001 = vld [vmem:[#allocation2 + $0x258] sm:$0xff]
    %v1002 = vld [vmem:[#allocation2 + $0x260] sm:$0xff]
    %v1003 = vld [vmem:[#allocation2 + $0x268] sm:$0xff]
    %v1004 = vld [vmem:[#allocation2 + $0x270] sm:$0xff]
    %v1005 = vld [vmem:[#allocation2 + $0x278] sm:$0x1]
    %v1006 = vld [vmem:[#allocation2 + $0x280] sm:$0x1]
    %v1007 = vld [vmem:[#allocation2 + $0x288] sm:$0x1]
    %v1008 = vperm.slane %v976, 0
    %v1010 = vsel %vm148, %v970, 0
    %v1013 = vsel %vm148, %v971, 0
    %1015 = vmatpush.msra.mxu0 0.0
    %1016 = vmatpush.msra.mxu0 0.0
    %1017 = vmatpush.msra.mxu0 0.0
    %1018 = vmatpush.msra.mxu0 0.0
    %1019 = vmatpush.msra.mxu0 0.0
    %1020 = vmatpush.msra.mxu0 0.0
    %1021 = vmatpush.msra.mxu0 0.0
    %1022 = vmatpush.msra.mxu0 0.0
    %1023 = vmatpush.msra.mxu0 0.0
    %1024 = vmatpush.msra.mxu0 0.0
    %1025 = vmatpush.msra.mxu0 0.0
    %1026 = vmatpush.msra.mxu0 0.0
    %1027 = vmatpush.msra.mxu0 %v975
    %1028 = vmatpush.msra.mxu0 %v974
    %1029 = vmatpush.msra.mxu0 %v973
    %1030 = vmatpush.msra.mxu0 %v972
    %1031 = vmatmul.f32.gmra.mxu0 %v1010
    %v1032 = vpop.f32.mrf.mxu0
    %v1033 = vadd.f32 %v1008, %v1032
    %1034 = vmatmul.f32.gmra.mxu0 %v1013
    %v1035 = vpop.f32.mrf.mxu0
    %v1036 = vadd.f32 %v1008, %v1035
    %1037 = vdwg.mxu0
    %1040 = vrot.lane.b32.xlu0 %v1033, 96
    %v1041 = vpop.permute.xlu0 %1040
    %1042 = vrot.lane.b32.xlu0 %v1036, 96
    %v1043 = vpop.permute.xlu0 %1042
    %v1044 = vsel %vm184, %v1033, 0
    %v1046 = vsel %vm184, %v1036, 0
    %v1048 = vsel %vm184, %v1041, 0
    %v1050 = vsel %vm184, %v1043, 0
    %1052 = vmatpush.xpose.msra.mxu0 0.0
    %1053 = vmatpush.xpose.msra.mxu0 0.0
    %1054 = vmatpush.xpose.msra.mxu0 0.0
    %1055 = vmatpush.xpose.msra.mxu0 0.0
    %1056 = vmatpush.xpose.msra.mxu0 0.0
    %1057 = vmatpush.xpose.msra.mxu0 0.0
    %1058 = vmatpush.xpose.msra.mxu0 0.0
    %1059 = vmatpush.xpose.msra.mxu0 0.0
    %1060 = vmatpush.xpose.msra.mxu0 0.0
    %1061 = vmatpush.xpose.msra.mxu0 0.0
    %1062 = vmatpush.xpose.msra.mxu0 0.0
    %1063 = vmatpush.xpose.msra.mxu0 0.0
    %1064 = vmatpush.xpose.msra.mxu0 0.0
    %1065 = vmatpush.xpose.msra.mxu0 0.0
    %1066 = vmatpush.xpose.msra.mxu0 %v1050
    %1067 = vmatpush.xpose.msra.mxu0 %v1048
    %1068 = vmatmul.f32.gmra.mxu0 %v1044
    %v1069 = vpop.f32.mrf.mxu0
    %v1070 = vadd.f32 0.0, %v1069
    %1071 = vmatmul.f32.gmra.mxu0 %v1046
    %v1072 = vpop.f32.mrf.mxu0
    %v1073 = vadd.f32 0.0, %v1072
    %1074 = vdwg.mxu0
    %1075 = vrot.lane.b32.xlu0 %v1033, 120
    %v1076 = vpop.permute.xlu0 %1075
    %1077 = vrot.lane.b32.xlu0 %v1036, 120
    %v1078 = vpop.permute.xlu0 %1077
    %1079 = vrot.lane.b32.xlu0 %v1033, 88
    %v1080 = vpop.permute.xlu0 %1079
    %1081 = vrot.lane.b32.xlu0 %v1036, 88
    %v1082 = vpop.permute.xlu0 %1081
    %v1083 = vsel %vm184, %v1076, 0
    %v1085 = vsel %vm184, %v1078, 0
    %v1087 = vsel %vm184, %v1080, 0
    %v1089 = vsel %vm184, %v1082, 0
    %1091 = vmatpush.xpose.msra.mxu0 0.0
    %1092 = vmatpush.xpose.msra.mxu0 0.0
    %1093 = vmatpush.xpose.msra.mxu0 0.0
    %1094 = vmatpush.xpose.msra.mxu0 0.0
    %1095 = vmatpush.xpose.msra.mxu0 0.0
    %1096 = vmatpush.xpose.msra.mxu0 0.0
    %1097 = vmatpush.xpose.msra.mxu0 0.0
    %1098 = vmatpush.xpose.msra.mxu0 0.0
    %1099 = vmatpush.xpose.msra.mxu0 0.0
    %1100 = vmatpush.xpose.msra.mxu0 0.0
    %1101 = vmatpush.xpose.msra.mxu0 0.0
    %1102 = vmatpush.xpose.msra.mxu0 0.0
    %1103 = vmatpush.xpose.msra.mxu0 0.0
    %1104 = vmatpush.xpose.msra.mxu0 0.0
    %1105 = vmatpush.xpose.msra.mxu0 %v1089
    %1106 = vmatpush.xpose.msra.mxu0 %v1087
    %1107 = vmatmul.f32.gmra.mxu0 %v1083
    %v1108 = vpop.f32.mrf.mxu0
    %v1109 = vadd.f32 0.0, %v1108
    %1110 = vmatmul.f32.gmra.mxu0 %v1085
    %v1111 = vpop.f32.mrf.mxu0
    %v1112 = vadd.f32 0.0, %v1111
    %1113 = vdwg.mxu0
    %1114 = vrot.lane.b32.xlu0 %v1033, 112
    %v1115 = vpop.permute.xlu0 %1114
    %1116 = vrot.lane.b32.xlu0 %v1036, 112
    %v1117 = vpop.permute.xlu0 %1116
    %1118 = vrot.lane.b32.xlu0 %v1033, 80
    %v1119 = vpop.permute.xlu0 %1118
    %1120 = vrot.lane.b32.xlu0 %v1036, 80
    %v1121 = vpop.permute.xlu0 %1120
    %v1122 = vsel %vm184, %v1115, 0
    %v1124 = vsel %vm184, %v1117, 0
    %v1126 = vsel %vm184, %v1119, 0
    %v1128 = vsel %vm184, %v1121, 0
    %1130 = vmatpush.xpose.msra.mxu0 0.0
    %1131 = vmatpush.xpose.msra.mxu0 0.0
    %1132 = vmatpush.xpose.msra.mxu0 0.0
    %1133 = vmatpush.xpose.msra.mxu0 0.0
    %1134 = vmatpush.xpose.msra.mxu0 0.0
    %1135 = vmatpush.xpose.msra.mxu0 0.0
    %1136 = vmatpush.xpose.msra.mxu0 0.0
    %1137 = vmatpush.xpose.msra.mxu0 0.0
    %1138 = vmatpush.xpose.msra.mxu0 0.0
    %1139 = vmatpush.xpose.msra.mxu0 0.0
    %1140 = vmatpush.xpose.msra.mxu0 0.0
    %1141 = vmatpush.xpose.msra.mxu0 0.0
    %1142 = vmatpush.xpose.msra.mxu0 0.0
    %1143 = vmatpush.xpose.msra.mxu0 0.0
    %1144 = vmatpush.xpose.msra.mxu0 %v1128
    %1145 = vmatpush.xpose.msra.mxu0 %v1126
    %1146 = vmatmul.f32.gmra.mxu0 %v1122
    %v1147 = vpop.f32.mrf.mxu0
    %v1148 = vadd.f32 0.0, %v1147
    %1149 = vmatmul.f32.gmra.mxu0 %v1124
    %v1150 = vpop.f32.mrf.mxu0
    %v1151 = vadd.f32 0.0, %v1150
    %1152 = vdwg.mxu0
    %1153 = vrot.lane.b32.xlu0 %v1033, 104
    %v1154 = vpop.permute.xlu0 %1153
    %1155 = vrot.lane.b32.xlu0 %v1036, 104
    %v1156 = vpop.permute.xlu0 %1155
    %1157 = vrot.lane.b32.xlu0 %v1033, 72
    %v1158 = vpop.permute.xlu0 %1157
    %1159 = vrot.lane.b32.xlu0 %v1036, 72
    %v1160 = vpop.permute.xlu0 %1159
    %v1161 = vsel %vm184, %v1154, 0
    %v1163 = vsel %vm184, %v1156, 0
    %v1165 = vsel %vm184, %v1158, 0
    %v1167 = vsel %vm184, %v1160, 0
    %1169 = vmatpush.xpose.msra.mxu0 0.0
    %1170 = vmatpush.xpose.msra.mxu0 0.0
    %1171 = vmatpush.xpose.msra.mxu0 0.0
    %1172 = vmatpush.xpose.msra.mxu0 0.0
    %1173 = vmatpush.xpose.msra.mxu0 0.0
    %1174 = vmatpush.xpose.msra.mxu0 0.0
    %1175 = vmatpush.xpose.msra.mxu0 0.0
    %1176 = vmatpush.xpose.msra.mxu0 0.0
    %1177 = vmatpush.xpose.msra.mxu0 0.0
    %1178 = vmatpush.xpose.msra.mxu0 0.0
    %1179 = vmatpush.xpose.msra.mxu0 0.0
    %1180 = vmatpush.xpose.msra.mxu0 0.0
    %1181 = vmatpush.xpose.msra.mxu0 0.0
    %1182 = vmatpush.xpose.msra.mxu0 0.0
    %1183 = vmatpush.xpose.msra.mxu0 %v1167
    %1184 = vmatpush.xpose.msra.mxu0 %v1165
    %1185 = vmatmul.f32.gmra.mxu0 %v1161
    %v1186 = vpop.f32.mrf.mxu0
    %v1187 = vadd.f32 0.0, %v1186
    %1188 = vmatmul.f32.gmra.mxu0 %v1163
    %v1189 = vpop.f32.mrf.mxu0
    %v1190 = vadd.f32 0.0, %v1189
    %1191 = vdwg.mxu0
    %v1192 = vmul.f32 %v1070, 0.35355338
    %v1193 = vmul.f32 %v1073, 0.35355338
    %v1194 = vmul.f32 %v1109, 0.35355338
    %v1195 = vmul.f32 %v1112, 0.35355338
    %v1196 = vmul.f32 %v1148, 0.35355338
    %v1197 = vmul.f32 %v1151, 0.35355338
    %v1198 = vmul.f32 %v1187, 0.35355338
    %v1199 = vmul.f32 %v1190, 0.35355338
    %v1200 = vadd.f32 %v1192, %v29
    %v1201 = vadd.f32 %v1193, %v30
    %v1202 = vadd.f32 %v1194, %v31
    %v1203 = vadd.f32 %v1195, %v32
    %v1204 = vadd.f32 %v1196, %v33
    %v1205 = vadd.f32 %v1197, %v34
    %v1206 = vadd.f32 %v1198, %v35
    %v1207 = vadd.f32 %v1199, %v36
    %v1208 = vsel %vm349, %v1200, -inf
    %1209 = vmax.xlane.f32.xlu0 %v1208
    %v1210 = vpop.xlane.xlu0 %1209
    %v1211 = vsel %vm349, %v1201, -inf
    %1212 = vmax.xlane.f32.xlu0 %v1211
    %v1213 = vpop.xlane.xlu0 %1212
    %v1214 = vsel %vm349, %v1202, -inf
    %1215 = vmax.xlane.f32.xlu0 %v1214
    %v1216 = vpop.xlane.xlu0 %1215
    %v1217 = vsel %vm349, %v1203, -inf
    %1218 = vmax.xlane.f32.xlu0 %v1217
    %v1219 = vpop.xlane.xlu0 %1218
    %v1220 = vsel %vm349, %v1204, -inf
    %1221 = vmax.xlane.f32.xlu0 %v1220
    %v1222 = vpop.xlane.xlu0 %1221
    %v1223 = vsel %vm349, %v1205, -inf
    %1224 = vmax.xlane.f32.xlu0 %v1223
    %v1225 = vpop.xlane.xlu0 %1224
    %v1226 = vsel %vm349, %v1206, -inf
    %1227 = vmax.xlane.f32.xlu0 %v1226
    %v1228 = vpop.xlane.xlu0 %1227
    %v1229 = vsel %vm349, %v1207, -inf
    %1230 = vmax.xlane.f32.xlu0 %v1229
    %v1231 = vpop.xlane.xlu0 %1230
    %v1232 = vsub.f32 %v1200, %v1210
    %v1233 = vsub.f32 %v1201, %v1213
    %v1234 = vsub.f32 %v1202, %v1216
    %v1235 = vsub.f32 %v1203, %v1219
    %v1236 = vsub.f32 %v1204, %v1222
    %v1237 = vsub.f32 %v1205, %v1225
    %v1238 = vsub.f32 %v1206, %v1228
    %v1239 = vsub.f32 %v1207, %v1231
    %v1240 = vmul.f32 %v1232, 1.442695
    %v1241 = vpow.pop %v1240
    %v1242 = vmul.f32 %v1233, 1.442695
    %v1243 = vpow.pop %v1242
    %v1244 = vmul.f32 %v1234, 1.442695
    %v1245 = vpow.pop %v1244
    %v1246 = vmul.f32 %v1235, 1.442695
    %v1247 = vpow.pop %v1246
    %v1248 = vmul.f32 %v1236, 1.442695
    %v1249 = vpow.pop %v1248
    %v1250 = vmul.f32 %v1237, 1.442695
    %v1251 = vpow.pop %v1250
    %v1252 = vmul.f32 %v1238, 1.442695
    %v1253 = vpow.pop %v1252
    %v1254 = vmul.f32 %v1239, 1.442695
    %v1255 = vpow.pop %v1254
    %v1256 = vsel %vm349, %v1241, 0.0
    %1257 = vadd.xlane.f32.xlu0 %v1256
    %v1258 = vpop.xlane.xlu0 %1257
    %v1259 = vsel %vm349, %v1243, 0.0
    %1260 = vadd.xlane.f32.xlu0 %v1259
    %v1261 = vpop.xlane.xlu0 %1260
    %v1262 = vsel %vm349, %v1245, 0.0
    %1263 = vadd.xlane.f32.xlu0 %v1262
    %v1264 = vpop.xlane.xlu0 %1263
    %v1265 = vsel %vm349, %v1247, 0.0
    %1266 = vadd.xlane.f32.xlu0 %v1265
    %v1267 = vpop.xlane.xlu0 %1266
    %v1268 = vsel %vm349, %v1249, 0.0
    %1269 = vadd.xlane.f32.xlu0 %v1268
    %v1270 = vpop.xlane.xlu0 %1269
    %v1271 = vsel %vm349, %v1251, 0.0
    %1272 = vadd.xlane.f32.xlu0 %v1271
    %v1273 = vpop.xlane.xlu0 %1272
    %v1274 = vsel %vm349, %v1253, 0.0
    %1275 = vadd.xlane.f32.xlu0 %v1274
    %v1276 = vpop.xlane.xlu0 %1275
    %v1277 = vsel %vm349, %v1255, 0.0
    %1278 = vadd.xlane.f32.xlu0 %v1277
    %v1279 = vpop.xlane.xlu0 %1278
    %v1280 = vrcp.pop %v1258
    %v1281 = vmul.f32 %v1258, %v1280
    %v1282 = vsub.f32 1.0, %v1281
    %v1283 = vmul.f32 %v1280, %v1282
    %v1284 = vadd.f32 %v1280, %v1283
    %vm1285 = vweird.f32 %v1258
    %vm1286 = vweird.f32 %v1280
    %vm1287 = vmor %vm1285, %vm1286
    %v1288 = vsel %vm1287, %v1280, %v1284
    %v1289 = vand.u32 2147483647, %v1258
    %vm1290 = vcmp.eq.f32.partialorder %v1289, 8.507059e+37
    %v1291 = vand.u32 %v1258, 2147483648
    %v1292 = vor.u32 1.1754944e-38, %v1291
    %v1293 = vsel %vm1290, %v1292, %v1288
    %v1294 = vmul.f32 %v1241, %v1293
    %v1295 = vrcp.pop %v1261
    %v1296 = vmul.f32 %v1261, %v1295
    %v1297 = vsub.f32 1.0, %v1296
    %v1298 = vmul.f32 %v1295, %v1297
    %v1299 = vadd.f32 %v1295, %v1298
    %vm1300 = vweird.f32 %v1261
    %vm1301 = vweird.f32 %v1295
    %vm1302 = vmor %vm1300, %vm1301
    %v1303 = vsel %vm1302, %v1295, %v1299
    %v1304 = vand.u32 2147483647, %v1261
    %vm1305 = vcmp.eq.f32.partialorder %v1304, 8.507059e+37
    %v1306 = vand.u32 %v1261, 2147483648
    %v1307 = vor.u32 1.1754944e-38, %v1306
    %v1308 = vsel %vm1305, %v1307, %v1303
    %v1309 = vmul.f32 %v1243, %v1308
    %v1310 = vrcp.pop %v1264
    %v1311 = vmul.f32 %v1264, %v1310
    %v1312 = vsub.f32 1.0, %v1311
    %v1313 = vmul.f32 %v1310, %v1312
    %v1314 = vadd.f32 %v1310, %v1313
    %vm1315 = vweird.f32 %v1264
    %vm1316 = vweird.f32 %v1310
    %vm1317 = vmor %vm1315, %vm1316
    %v1318 = vsel %vm1317, %v1310, %v1314
    %v1319 = vand.u32 2147483647, %v1264
    %vm1320 = vcmp.eq.f32.partialorder %v1319, 8.507059e+37
    %v1321 = vand.u32 %v1264, 2147483648
    %v1322 = vor.u32 1.1754944e-38, %v1321
    %v1323 = vsel %vm1320, %v1322, %v1318
    %v1324 = vmul.f32 %v1245, %v1323
    %v1325 = vrcp.pop %v1267
    %v1326 = vmul.f32 %v1267, %v1325
    %v1327 = vsub.f32 1.0, %v1326
    %v1328 = vmul.f32 %v1325, %v1327
    %v1329 = vadd.f32 %v1325, %v1328
    %vm1330 = vweird.f32 %v1267
    %vm1331 = vweird.f32 %v1325
    %vm1332 = vmor %vm1330, %vm1331
    %v1333 = vsel %vm1332, %v1325, %v1329
    %v1334 = vand.u32 2147483647, %v1267
    %vm1335 = vcmp.eq.f32.partialorder %v1334, 8.507059e+37
    %v1336 = vand.u32 %v1267, 2147483648
    %v1337 = vor.u32 1.1754944e-38, %v1336
    %v1338 = vsel %vm1335, %v1337, %v1333
    %v1339 = vmul.f32 %v1247, %v1338
    %v1340 = vrcp.pop %v1270
    %v1341 = vmul.f32 %v1270, %v1340
    %v1342 = vsub.f32 1.0, %v1341
    %v1343 = vmul.f32 %v1340, %v1342
    %v1344 = vadd.f32 %v1340, %v1343
    %vm1345 = vweird.f32 %v1270
    %vm1346 = vweird.f32 %v1340
    %vm1347 = vmor %vm1345, %vm1346
    %v1348 = vsel %vm1347, %v1340, %v1344
    %v1349 = vand.u32 2147483647, %v1270
    %vm1350 = vcmp.eq.f32.partialorder %v1349, 8.507059e+37
    %v1351 = vand.u32 %v1270, 2147483648
    %v1352 = vor.u32 1.1754944e-38, %v1351
    %v1353 = vsel %vm1350, %v1352, %v1348
    %v1354 = vmul.f32 %v1249, %v1353
    %v1355 = vrcp.pop %v1273
    %v1356 = vmul.f32 %v1273, %v1355
    %v1357 = vsub.f32 1.0, %v1356
    %v1358 = vmul.f32 %v1355, %v1357
    %v1359 = vadd.f32 %v1355, %v1358
    %vm1360 = vweird.f32 %v1273
    %vm1361 = vweird.f32 %v1355
    %vm1362 = vmor %vm1360, %vm1361
    %v1363 = vsel %vm1362, %v1355, %v1359
    %v1364 = vand.u32 2147483647, %v1273
    %vm1365 = vcmp.eq.f32.partialorder %v1364, 8.507059e+37
    %v1366 = vand.u32 %v1273, 2147483648
    %v1367 = vor.u32 1.1754944e-38, %v1366
    %v1368 = vsel %vm1365, %v1367, %v1363
    %v1369 = vmul.f32 %v1251, %v1368
    %v1370 = vrcp.pop %v1276
    %v1371 = vmul.f32 %v1276, %v1370
    %v1372 = vsub.f32 1.0, %v1371
    %v1373 = vmul.f32 %v1370, %v1372
    %v1374 = vadd.f32 %v1370, %v1373
    %vm1375 = vweird.f32 %v1276
    %vm1376 = vweird.f32 %v1370
    %vm1377 = vmor %vm1375, %vm1376
    %v1378 = vsel %vm1377, %v1370, %v1374
    %v1379 = vand.u32 2147483647, %v1276
    %vm1380 = vcmp.eq.f32.partialorder %v1379, 8.507059e+37
    %v1381 = vand.u32 %v1276, 2147483648
    %v1382 = vor.u32 1.1754944e-38, %v1381
    %v1383 = vsel %vm1380, %v1382, %v1378
    %v1384 = vmul.f32 %v1253, %v1383
    %v1385 = vrcp.pop %v1279
    %v1386 = vmul.f32 %v1279, %v1385
    %v1387 = vsub.f32 1.0, %v1386
    %v1388 = vmul.f32 %v1385, %v1387
    %v1389 = vadd.f32 %v1385, %v1388
    %vm1390 = vweird.f32 %v1279
    %vm1391 = vweird.f32 %v1385
    %vm1392 = vmor %vm1390, %vm1391
    %v1393 = vsel %vm1392, %v1385, %v1389
    %v1394 = vand.u32 2147483647, %v1279
    %vm1395 = vcmp.eq.f32.partialorder %v1394, 8.507059e+37
    %v1396 = vand.u32 %v1279, 2147483648
    %v1397 = vor.u32 1.1754944e-38, %v1396
    %v1398 = vsel %vm1395, %v1397, %v1393
    %v1399 = vmul.f32 %v1255, %v1398
    %1400 = vrot.lane.b32.xlu0 %v1033, 64
    %v1401 = vpop.permute.xlu0 %1400
    %1402 = vrot.lane.b32.xlu0 %v1036, 64
    %v1403 = vpop.permute.xlu0 %1402
    %v1407 = vsel %vm349, %v1294, 0
    %v1410 = vsel %vm349, %v1309, 0
    %1412 = vmatpush.msra.mxu0 0.0
    %1413 = vmatpush.msra.mxu0 0.0
    %1414 = vmatpush.msra.mxu0 0.0
    %1415 = vmatpush.msra.mxu0 0.0
    %1416 = vmatpush.msra.mxu0 0.0
    %1417 = vmatpush.msra.mxu0 0.0
    %1418 = vmatpush.msra.mxu0 0.0
    %1419 = vmatpush.msra.mxu0 0.0
    %1420 = vmatpush.msra.mxu0 0.0
    %1421 = vmatpush.msra.mxu0 0.0
    %1422 = vmatpush.msra.mxu0 0.0
    %1423 = vmatpush.msra.mxu0 0.0
    %1424 = vmatpush.msra.mxu0 0.0
    %1425 = vmatpush.msra.mxu0 0.0
    %1426 = vmatpush.msra.mxu0 %v1403
    %1427 = vmatpush.msra.mxu0 %v1401
    %1428 = vmatmul.f32.gmra.mxu0 %v1407
    %v1429 = vpop.f32.mrf.mxu0
    %v1430 = vadd.f32 0.0, %v1429
    %1431 = vmatmul.f32.gmra.mxu0 %v1410
    %v1432 = vpop.f32.mrf.mxu0
    %v1433 = vadd.f32 0.0, %v1432
    %1434 = vdwg.mxu0
    %1435 = vrot.lane.b32.xlu0 %v1033, 56
    %v1436 = vpop.permute.xlu0 %1435
    %1437 = vrot.lane.b32.xlu0 %v1036, 56
    %v1438 = vpop.permute.xlu0 %1437
    %v1442 = vsel %vm349, %v1324, 0
    %v1445 = vsel %vm349, %v1339, 0
    %1447 = vmatpush.msra.mxu0 0.0
    %1448 = vmatpush.msra.mxu0 0.0
    %1449 = vmatpush.msra.mxu0 0.0
    %1450 = vmatpush.msra.mxu0 0.0
    %1451 = vmatpush.msra.mxu0 0.0
    %1452 = vmatpush.msra.mxu0 0.0
    %1453 = vmatpush.msra.mxu0 0.0
    %1454 = vmatpush.msra.mxu0 0.0
    %1455 = vmatpush.msra.mxu0 0.0
    %1456 = vmatpush.msra.mxu0 0.0
    %1457 = vmatpush.msra.mxu0 0.0
    %1458 = vmatpush.msra.mxu0 0.0
    %1459 = vmatpush.msra.mxu0 0.0
    %1460 = vmatpush.msra.mxu0 0.0
    %1461 = vmatpush.msra.mxu0 %v1438
    %1462 = vmatpush.msra.mxu0 %v1436
    %1463 = vmatmul.f32.gmra.mxu0 %v1442
    %v1464 = vpop.f32.mrf.mxu0
    %v1465 = vadd.f32 0.0, %v1464
    %1466 = vmatmul.f32.gmra.mxu0 %v1445
    %v1467 = vpop.f32.mrf.mxu0
    %v1468 = vadd.f32 0.0, %v1467
    %1469 = vdwg.mxu0
    %v1471 = vsel %vm184, %v1465, 0
    %v1474 = vsel %vm184, %v1468, 0
    %1476 = vmatpush.msra.mxu0 0.0
    %1477 = vmatpush.msra.mxu0 0.0
    %1478 = vmatpush.msra.mxu0 0.0
    %1479 = vmatpush.msra.mxu0 0.0
    %1480 = vmatpush.msra.mxu0 0.0
    %1481 = vmatpush.msra.mxu0 0.0
    %1482 = vmatpush.msra.mxu0 0.0
    %1483 = vmatpush.msra.mxu0 0.0
    %1484 = vmatpush.msra.mxu0 0.0
    %1485 = vmatpush.msra.mxu0 0.0
    %1486 = vmatpush.msra.mxu0 0.0
    %1487 = vmatpush.msra.mxu0 0.0
    %1488 = vmatpush.msra.mxu0 0.0
    %1489 = vmatpush.msra.mxu0 0.0
    %1490 = vmatpush.msra.mxu0 0.0
    %1491 = vmatpush.msra.mxu0 %v978
    %1492 = vmatmul.f32.gmra.mxu0 %v1471
    %v1493 = vpop.f32.mrf.mxu0
    %v1494 = vadd.f32 0.0, %v1493
    %1495 = vmatmul.f32.gmra.mxu0 %v1474
    %v1496 = vpop.f32.mrf.mxu0
    %v1497 = vadd.f32 0.0, %v1496
    %1498 = vdwg.mxu0
    %v1500 = vsel %vm184, %v1430, 0
    %v1503 = vsel %vm184, %v1433, 0
    %1505 = vmatpush.msra.mxu0 0.0
    %1506 = vmatpush.msra.mxu0 0.0
    %1507 = vmatpush.msra.mxu0 0.0
    %1508 = vmatpush.msra.mxu0 0.0
    %1509 = vmatpush.msra.mxu0 0.0
    %1510 = vmatpush.msra.mxu0 0.0
    %1511 = vmatpush.msra.mxu0 0.0
    %1512 = vmatpush.msra.mxu0 0.0
    %1513 = vmatpush.msra.mxu0 0.0
    %1514 = vmatpush.msra.mxu0 0.0
    %1515 = vmatpush.msra.mxu0 0.0
    %1516 = vmatpush.msra.mxu0 0.0
    %1517 = vmatpush.msra.mxu0 0.0
    %1518 = vmatpush.msra.mxu0 0.0
    %1519 = vmatpush.msra.mxu0 0.0
    %1520 = vmatpush.msra.mxu0 %v977
    %1521 = vmatmul.f32.gmra.mxu0 %v1500
    %v1522 = vpop.f32.mrf.mxu0
    %v1523 = vadd.f32 %v1494, %v1522
    %1524 = vmatmul.f32.gmra.mxu0 %v1503
    %v1525 = vpop.f32.mrf.mxu0
    %v1526 = vadd.f32 %v1497, %v1525
    %1527 = vdwg.mxu0
    %1528 = vrot.lane.b32.xlu0 %v1033, 48
    %v1529 = vpop.permute.xlu0 %1528
    %1530 = vrot.lane.b32.xlu0 %v1036, 48
    %v1531 = vpop.permute.xlu0 %1530
    %v1535 = vsel %vm349, %v1354, 0
    %v1538 = vsel %vm349, %v1369, 0
    %1540 = vmatpush.msra.mxu0 0.0
    %1541 = vmatpush.msra.mxu0 0.0
    %1542 = vmatpush.msra.mxu0 0.0
    %1543 = vmatpush.msra.mxu0 0.0
    %1544 = vmatpush.msra.mxu0 0.0
    %1545 = vmatpush.msra.mxu0 0.0
    %1546 = vmatpush.msra.mxu0 0.0
    %1547 = vmatpush.msra.mxu0 0.0
    %1548 = vmatpush.msra.mxu0 0.0
    %1549 = vmatpush.msra.mxu0 0.0
    %1550 = vmatpush.msra.mxu0 0.0
    %1551 = vmatpush.msra.mxu0 0.0
    %1552 = vmatpush.msra.mxu0 0.0
    %1553 = vmatpush.msra.mxu0 0.0
    %1554 = vmatpush.msra.mxu0 %v1531
    %1555 = vmatpush.msra.mxu0 %v1529
    %1556 = vmatmul.f32.gmra.mxu0 %v1535
    %v1557 = vpop.f32.mrf.mxu0
    %v1558 = vadd.f32 0.0, %v1557
    %1559 = vmatmul.f32.gmra.mxu0 %v1538
    %v1560 = vpop.f32.mrf.mxu0
    %v1561 = vadd.f32 0.0, %v1560
    %1562 = vdwg.mxu0
    %v1564 = vsel %vm184, %v1558, 0
    %v1567 = vsel %vm184, %v1561, 0
    %1569 = vmatpush.msra.mxu0 0.0
    %1570 = vmatpush.msra.mxu0 0.0
    %1571 = vmatpush.msra.mxu0 0.0
    %1572 = vmatpush.msra.mxu0 0.0
    %1573 = vmatpush.msra.mxu0 0.0
    %1574 = vmatpush.msra.mxu0 0.0
    %1575 = vmatpush.msra.mxu0 0.0
    %1576 = vmatpush.msra.mxu0 0.0
    %1577 = vmatpush.msra.mxu0 0.0
    %1578 = vmatpush.msra.mxu0 0.0
    %1579 = vmatpush.msra.mxu0 0.0
    %1580 = vmatpush.msra.mxu0 0.0
    %1581 = vmatpush.msra.mxu0 0.0
    %1582 = vmatpush.msra.mxu0 0.0
    %1583 = vmatpush.msra.mxu0 0.0
    %1584 = vmatpush.msra.mxu0 %v979
    %1585 = vmatmul.f32.gmra.mxu0 %v1564
    %v1586 = vpop.f32.mrf.mxu0
    %v1587 = vadd.f32 0.0, %v1586
    %1588 = vmatmul.f32.gmra.mxu0 %v1567
    %v1589 = vpop.f32.mrf.mxu0
    %v1590 = vadd.f32 0.0, %v1589
    %1591 = vdwg.mxu0
    %v1592 = vadd.f32 %v1523, %v1587
    %v1593 = vadd.f32 %v1526, %v1590
    %1594 = vrot.lane.b32.xlu0 %v1033, 40
    %v1595 = vpop.permute.xlu0 %1594
    %1596 = vrot.lane.b32.xlu0 %v1036, 40
    %v1597 = vpop.permute.xlu0 %1596
    %v1601 = vsel %vm349, %v1384, 0
    %v1604 = vsel %vm349, %v1399, 0
    %1606 = vmatpush.msra.mxu0 0.0
    %1607 = vmatpush.msra.mxu0 0.0
    %1608 = vmatpush.msra.mxu0 0.0
    %1609 = vmatpush.msra.mxu0 0.0
    %1610 = vmatpush.msra.mxu0 0.0
    %1611 = vmatpush.msra.mxu0 0.0
    %1612 = vmatpush.msra.mxu0 0.0
    %1613 = vmatpush.msra.mxu0 0.0
    %1614 = vmatpush.msra.mxu0 0.0
    %1615 = vmatpush.msra.mxu0 0.0
    %1616 = vmatpush.msra.mxu0 0.0
    %1617 = vmatpush.msra.mxu0 0.0
    %1618 = vmatpush.msra.mxu0 0.0
    %1619 = vmatpush.msra.mxu0 0.0
    %1620 = vmatpush.msra.mxu0 %v1597
    %1621 = vmatpush.msra.mxu0 %v1595
    %1622 = vmatmul.f32.gmra.mxu0 %v1601
    %v1623 = vpop.f32.mrf.mxu0
    %v1624 = vadd.f32 0.0, %v1623
    %1625 = vmatmul.f32.gmra.mxu0 %v1604
    %v1626 = vpop.f32.mrf.mxu0
    %v1627 = vadd.f32 0.0, %v1626
    %1628 = vdwg.mxu0
    %v1630 = vsel %vm184, %v1624, 0
    %v1633 = vsel %vm184, %v1627, 0
    %1635 = vmatpush.msra.mxu0 0.0
    %1636 = vmatpush.msra.mxu0 0.0
    %1637 = vmatpush.msra.mxu0 0.0
    %1638 = vmatpush.msra.mxu0 0.0
    %1639 = vmatpush.msra.mxu0 0.0
    %1640 = vmatpush.msra.mxu0 0.0
    %1641 = vmatpush.msra.mxu0 0.0
    %1642 = vmatpush.msra.mxu0 0.0
    %1643 = vmatpush.msra.mxu0 0.0
    %1644 = vmatpush.msra.mxu0 0.0
    %1645 = vmatpush.msra.mxu0 0.0
    %1646 = vmatpush.msra.mxu0 0.0
    %1647 = vmatpush.msra.mxu0 0.0
    %1648 = vmatpush.msra.mxu0 0.0
    %1649 = vmatpush.msra.mxu0 0.0
    %1650 = vmatpush.msra.mxu0 %v980
    %1651 = vmatmul.f32.gmra.mxu0 %v1630
    %v1652 = vpop.f32.mrf.mxu0
    %v1653 = vadd.f32 0.0, %v1652
    %1654 = vmatmul.f32.gmra.mxu0 %v1633
    %v1655 = vpop.f32.mrf.mxu0
    %v1656 = vadd.f32 0.0, %v1655
    %1657 = vdwg.mxu0
    %v1658 = vadd.f32 %v1592, %v1653
    %v1659 = vadd.f32 %v1593, %v1656
    %v1660 = vperm.slane %v981, 0
    %v1661 = vadd.f32 %v1658, %v1660
    %v1662 = vadd.f32 %v1659, %v1660
    %v1663 = vadd.f32 %v970, %v1661
    %v1664 = vadd.f32 %v971, %v1662
    %v1665 = vsel %vm148, %v1663, 0.0
    %1666 = vadd.xlane.f32.xlu0 %v1665
    %v1667 = vpop.xlane.xlu0 %1666
    %v1668 = vsel %vm148, %v1664, 0.0
    %1669 = vadd.xlane.f32.xlu0 %v1668
    %v1670 = vpop.xlane.xlu0 %1669
    %v1671 = vmul.f32 %v1667, %v819
    %v1672 = vmul.f32 %v1670, %v819
    %v1673 = vsub.f32 %v1663, %v1671
    %v1674 = vsub.f32 %v1664, %v1672
    %v1675 = vmul.f32 %v1673, %v1673
    %v1676 = vmul.f32 %v1674, %v1674
    %v1677 = vsel %vm148, %v1675, 0.0
    %1678 = vadd.xlane.f32.xlu0 %v1677
    %v1679 = vpop.xlane.xlu0 %1678
    %v1680 = vsel %vm148, %v1676, 0.0
    %1681 = vadd.xlane.f32.xlu0 %v1680
    %v1682 = vpop.xlane.xlu0 %1681
    %v1683 = vmul.f32 %v1679, %v819
    %v1684 = vmul.f32 %v1682, %v819
    %v1685 = vadd.f32 %v1683, 1e-05
    %v1686 = vadd.f32 %v1684, 1e-05
    %v1687 = vrsqrt.pop %v1685
    %v1688 = vmul.f32 %v1687, %v1685
    %v1689 = vmul.f32 %v1688, %v1687
    %v1690 = vmul.f32 0.5, %v1689
    %v1691 = vsub.f32 1.5, %v1690
    %v1692 = vmul.f32 %v1687, %v1691
    %vm1693 = vweird.f32 %v1685
    %vm1694 = vweird.f32 %v1687
    %vm1695 = vmor %vm1693, %vm1694
    %v1696 = vsel %vm1695, %v1687, %v1692
    %v1697 = vrsqrt.pop %v1686
    %v1698 = vmul.f32 %v1697, %v1686
    %v1699 = vmul.f32 %v1698, %v1697
    %v1700 = vmul.f32 0.5, %v1699
    %v1701 = vsub.f32 1.5, %v1700
    %v1702 = vmul.f32 %v1697, %v1701
    %vm1703 = vweird.f32 %v1686
    %vm1704 = vweird.f32 %v1697
    %vm1705 = vmor %vm1703, %vm1704
    %v1706 = vsel %vm1705, %v1697, %v1702
    %v1707 = vmul.f32 %v1673, %v1696
    %v1708 = vmul.f32 %v1674, %v1706
    %v1709 = vperm.slane %v982, 0
    %v1710 = vmul.f32 %v1707, %v1709
    %v1711 = vmul.f32 %v1708, %v1709
    %v1712 = vperm.slane %v983, 0
    %v1713 = vadd.f32 %v1710, %v1712
    %v1714 = vadd.f32 %v1711, %v1712
    %v1715 = vperm.slane %v988, 0
    %v1717 = vsel %vm148, %v1713, 0
    %v1720 = vsel %vm148, %v1714, 0
    %1722 = vmatpush.msra.mxu0 0.0
    %1723 = vmatpush.msra.mxu0 0.0
    %1724 = vmatpush.msra.mxu0 0.0
    %1725 = vmatpush.msra.mxu0 0.0
    %1726 = vmatpush.msra.mxu0 0.0
    %1727 = vmatpush.msra.mxu0 0.0
    %1728 = vmatpush.msra.mxu0 0.0
    %1729 = vmatpush.msra.mxu0 0.0
    %1730 = vmatpush.msra.mxu0 0.0
    %1731 = vmatpush.msra.mxu0 0.0
    %1732 = vmatpush.msra.mxu0 0.0
    %1733 = vmatpush.msra.mxu0 0.0
    %1734 = vmatpush.msra.mxu0 %v987
    %1735 = vmatpush.msra.mxu0 %v986
    %1736 = vmatpush.msra.mxu0 %v985
    %1737 = vmatpush.msra.mxu0 %v984
    %1738 = vmatmul.f32.gmra.mxu0 %v1717
    %v1739 = vpop.f32.mrf.mxu0
    %v1740 = vadd.f32 %v1715, %v1739
    %1741 = vmatmul.f32.gmra.mxu0 %v1720
    %v1742 = vpop.f32.mrf.mxu0
    %v1743 = vadd.f32 %v1715, %v1742
    %1744 = vdwg.mxu0
    %v1745 = vmax.f32 %v1740, 0.0
    %v1746 = vmax.f32 %v1743, 0.0
    %v1747 = vperm.slane %v1005, 0
    %1748 = vmatpush.msra.mxu0 %v1004
    %1749 = vmatpush.msra.mxu0 %v1003
    %1750 = vmatpush.msra.mxu0 %v1002
    %1751 = vmatpush.msra.mxu0 %v1001
    %1752 = vmatpush.msra.mxu0 %v1000
    %1753 = vmatpush.msra.mxu0 %v999
    %1754 = vmatpush.msra.mxu0 %v998
    %1755 = vmatpush.msra.mxu0 %v997
    %1756 = vmatpush.msra.mxu0 %v996
    %1757 = vmatpush.msra.mxu0 %v995
    %1758 = vmatpush.msra.mxu0 %v994
    %1759 = vmatpush.msra.mxu0 %v993
    %1760 = vmatpush.msra.mxu0 %v992
    %1761 = vmatpush.msra.mxu0 %v991
    %1762 = vmatpush.msra.mxu0 %v990
    %1763 = vmatpush.msra.mxu0 %v989
    %1764 = vmatmul.f32.gmra.mxu0 %v1745
    %v1765 = vpop.f32.mrf.mxu0
    %v1766 = vadd.f32 %v1747, %v1765
    %1767 = vmatmul.f32.gmra.mxu0 %v1746
    %v1768 = vpop.f32.mrf.mxu0
    %v1769 = vadd.f32 %v1747, %v1768
    %1770 = vdwg.mxu0
    %v1771 = vadd.f32 %v1713, %v1766
    %v1772 = vadd.f32 %v1714, %v1769
    %v1773 = vsel %vm148, %v1771, 0.0
    %1774 = vadd.xlane.f32.xlu0 %v1773
    %v1775 = vpop.xlane.xlu0 %1774
    %v1776 = vsel %vm148, %v1772, 0.0
    %1777 = vadd.xlane.f32.xlu0 %v1776
    %v1778 = vpop.xlane.xlu0 %1777
    %v1779 = vmul.f32 %v1775, %v819
    %v1780 = vmul.f32 %v1778, %v819
    %v1781 = vsub.f32 %v1771, %v1779
    %v1782 = vsub.f32 %v1772, %v1780
    %v1783 = vmul.f32 %v1781, %v1781
    %v1784 = vmul.f32 %v1782, %v1782
    %v1785 = vsel %vm148, %v1783, 0.0
    %1786 = vadd.xlane.f32.xlu0 %v1785
    %v1787 = vpop.xlane.xlu0 %1786
    %v1788 = vsel %vm148, %v1784, 0.0
    %1789 = vadd.xlane.f32.xlu0 %v1788
    %v1790 = vpop.xlane.xlu0 %1789
    %v1791 = vmul.f32 %v1787, %v819
    %v1792 = vmul.f32 %v1790, %v819
    %v1793 = vadd.f32 %v1791, 1e-05
    %v1794 = vadd.f32 %v1792, 1e-05
    %v1795 = vrsqrt.pop %v1793
    %v1796 = vmul.f32 %v1795, %v1793
    %v1797 = vmul.f32 %v1796, %v1795
    %v1798 = vmul.f32 0.5, %v1797
    %v1799 = vsub.f32 1.5, %v1798
    %v1800 = vmul.f32 %v1795, %v1799
    %vm1801 = vweird.f32 %v1793
    %vm1802 = vweird.f32 %v1795
    %vm1803 = vmor %vm1801, %vm1802
    %v1804 = vsel %vm1803, %v1795, %v1800
    %v1805 = vrsqrt.pop %v1794
    %v1806 = vmul.f32 %v1805, %v1794
    %v1807 = vmul.f32 %v1806, %v1805
    %v1808 = vmul.f32 0.5, %v1807
    %v1809 = vsub.f32 1.5, %v1808
    %v1810 = vmul.f32 %v1805, %v1809
    %vm1811 = vweird.f32 %v1794
    %vm1812 = vweird.f32 %v1805
    %vm1813 = vmor %vm1811, %vm1812
    %v1814 = vsel %vm1813, %v1805, %v1810
    %v1815 = vmul.f32 %v1781, %v1804
    %v1816 = vmul.f32 %v1782, %v1814
    %v1817 = vperm.slane %v1006, 0
    %v1818 = vmul.f32 %v1815, %v1817
    %v1819 = vmul.f32 %v1816, %v1817
    %v1820 = vperm.slane %v1007, 0
    %v1821 = vadd.f32 %v1818, %v1820
    %v1822 = vadd.f32 %v1819, %v1820
    %1823 = vxpose.xlu0.b32.start [1/16] %v1821, 128
    %1824 = vxpose.xlu0.b32.cont [2/16] %v1822, 128
    %1825 = vxpose.xlu0.b32.cont [3/16] 0.0, 128
    %1826 = vxpose.xlu0.b32.cont [4/16] 0.0, 128
    %1827 = vxpose.xlu0.b32.cont [5/16] 0.0, 128
    %1828 = vxpose.xlu0.b32.cont [6/16] 0.0, 128
    %1829 = vxpose.xlu0.b32.cont [7/16] 0.0, 128
    %1830 = vxpose.xlu0.b32.cont [8/16] 0.0, 128
    %1831 = vxpose.xlu0.b32.cont [9/16] 0.0, 128
    %1832 = vxpose.xlu0.b32.cont [10/16] 0.0, 128
    %1833 = vxpose.xlu0.b32.cont [11/16] 0.0, 128
    %1834 = vxpose.xlu0.b32.cont [12/16] 0.0, 128
    %1835 = vxpose.xlu0.b32.cont [13/16] 0.0, 128
    %1836 = vxpose.xlu0.b32.cont [14/16] 0.0, 128
    %1837 = vxpose.xlu0.b32.cont [15/16] 0.0, 128
    %1838 = vxpose.xlu0.b32.end [16/16] 0.0, 128
    %v1839 = vpop.trf.xlu0
    %v1840 = vpop.trf.xlu0
    %v1841 = vpop.trf.xlu0
    %v1842 = vpop.trf.xlu0
    %v1843 = vpop.trf.xlu0
    %v1844 = vpop.trf.xlu0
    %v1845 = vpop.trf.xlu0
    %v1846 = vpop.trf.xlu0
    %v1847 = vpop.trf.xlu0
    %v1848 = vpop.trf.xlu0
    %v1849 = vpop.trf.xlu0
    %v1850 = vpop.trf.xlu0
    %v1851 = vpop.trf.xlu0
    %v1852 = vpop.trf.xlu0
    %v1853 = vpop.trf.xlu0
    %v1854 = vpop.trf.xlu0
    %1855 = vst.msk [vmem:[%s2] sm:$0xff] %vm184, %v1839
    %1856 = vst.msk [vmem:[%s2 + $0x8] sm:$0xff] %vm184, %v1840
    %1857 = vst.msk [vmem:[%s2 + $0x10] sm:$0xff] %vm184, %v1841
    %1858 = vst.msk [vmem:[%s2 + $0x18] sm:$0xff] %vm184, %v1842
    %1863 = vrot.lane.b32.xlu0 %v1839, 120
    %v1864 = vpop.permute.xlu0 %1863
    %1865 = vrot.lane.b32.xlu0 %v1840, 120
    %v1866 = vpop.permute.xlu0 %1865
    %1867 = vrot.lane.b32.xlu0 %v1841, 120
    %v1868 = vpop.permute.xlu0 %1867
    %1869 = vrot.lane.b32.xlu0 %v1842, 120
    %v1870 = vpop.permute.xlu0 %1869
    %s1875 = scalar_lea.vmem %s2, 32
    %1876 = vst.msk [vmem:[%s1875] sm:$0xff] %vm184, %v1864
    %1877 = vst.msk [vmem:[%s1875 + $0x8] sm:$0xff] %vm184, %v1866
    %1878 = vst.msk [vmem:[%s1875 + $0x10] sm:$0xff] %vm184, %v1868
    %1879 = vst.msk [vmem:[%s1875 + $0x18] sm:$0xff] %vm184, %v1870
    // Predicated region
    $region14: #{_lambda_.1} parent=1 // pred_check
      _
    $region15: #{_lambda_.1} parent=1 // pred_check_branch
      %1881 = sbr.rel (0) target = $region17
    $region16: #{_lambda_.1} parent=1 // pred_region
      _
    $region17: #{_lambda_.1} parent=1 // pred_fallthru
      _
    // Predicated region
    $region18: #{_lambda_.1} parent=1 // pred_check
      _
    $region19: #{_lambda_.1} parent=1 // pred_check_branch
      %1883 = sbr.rel (0) target = $region21
    $region20: #{_lambda_.1} parent=1 // pred_region
      _
    $region21: #{_lambda_.1} parent=1 // pred_fallthru
      _
    %1884 = vsyncpa [#allocation3], 1

</llo_original>
